<compile_context>
chip_gen: v7x
topology: tpu7x:2x2x1
jax: 0.10.0
libtpu: 0.0.40
codegen_flags: <defaults>
</compile_context>

<pallas_src>
import functools
import math

import jax
import jax.numpy as jnp
from jax import lax
from jax.experimental import pallas as pl
from jax.experimental.pallas import tpu as pltpu


def _round_up(x, m):
    return (x + m - 1) // m * m


def _largest_aligned_divisor(k_pad, cap):
    """Largest multiple of 128 that divides k_pad and is <= cap."""
    best = 128
    for t in range(128, min(cap, k_pad) + 1, 128):
        if k_pad % t == 0:
            best = t
    return best


def _tpu_budget():
    """Generation-aware (vmem_limit_bytes, max K tile)."""
    try:
        cap = pltpu.get_tpu_info().vmem_capacity_bytes
    except Exception:
        cap = 64 * 1024 * 1024
    if cap <= 64 * 1024 * 1024:          # v7x: 64 MiB per TensorCore
        return 40 * 1024 * 1024, 1024
    return 100 * 1024 * 1024, 2048       # v5e / v6e: 128 MiB


def _pad_cast(a, shape, dtype):
    """Cast, and pad with zeros only if the shape is not already aligned."""
    a = a.astype(dtype)
    if a.shape == tuple(shape):
        return a
    pads = [(0, s - d) for d, s in zip(a.shape, shape)]
    return jnp.pad(a, pads)


# ---------------------------------------------------------------------------
# Fused kernel.
# grid = (batch_tiles, nk + nc): first nk steps are the K-tiled first matmul,
# the remaining nc steps are class-tiled ArcFace head steps.
# ---------------------------------------------------------------------------
def _mlnet_kernel(x_ref, w1_ref, b1_ref, w2_ref, b2_ref, wcls_ref, lbl_ref,
                  emb_ref, mar_ref, acc_ref, embn_ref,
                  *, nk, tc, s, cos_m, sin_m, th, mm):
    t = pl.program_id(1)

    # ---- phase 1: K-tiled first matmul (t in [0, nk)) ----
    @pl.when(t == 0)
    def _():
        acc_ref[...] = jnp.zeros_like(acc_ref)

    @pl.when(t < nk)
    def _():
        acc_ref[...] += jnp.dot(x_ref[...], w1_ref[...],
                                preferred_element_type=jnp.float32)

    # ---- phase 1 epilogue: bias + ReLU, second matmul, L2-normalize ----
    @pl.when(t == nk - 1)
    def _():
        h = jnp.maximum(acc_ref[...] + b1_ref[...], 0.0)
        emb = jnp.dot(h.astype(w2_ref.dtype), w2_ref[...],
                      preferred_element_type=jnp.float32) + b2_ref[...]
        emb_ref[...] = emb.astype(emb_ref.dtype)
        emb_n = emb * lax.rsqrt(jnp.sum(emb * emb, axis=-1, keepdims=True) + 1e-12)
        embn_ref[...] = emb_n.astype(embn_ref.dtype)   # bf16 carry for the head

    # ---- phase 2: class-tiled ArcFace head (t in [nk, nk + nc)) ----
    @pl.when(t >= nk)
    def _():
        c = t - nk                                      # class-tile index
        cos = jnp.dot(embn_ref[...], wcls_ref[...],
                      preferred_element_type=jnp.float32)
        cos = jnp.clip(cos, -1.0, 1.0)
        sin = jnp.sqrt(jnp.maximum(1.0 - cos * cos, 0.0))
        phi = cos * cos_m - sin * sin_m
        phi = jnp.where(cos > th, phi, cos - mm)        # standard (non-easy) ArcFace

        lbl_col = lbl_ref[...][:, :1]                   # per-row label, (tb, 1)
        col_ids = lax.broadcasted_iota(jnp.int32, cos.shape, 1) + c * tc
        one_hot = col_ids == lbl_col
        mar_ref[...] = (s * jnp.where(one_hot, phi, cos)).astype(mar_ref.dtype)


# ---------------------------------------------------------------------------
# Wrapper: tiling decisions, minimal padding, grid/BlockSpec construction.
# ---------------------------------------------------------------------------
@functools.partial(jax.jit, static_argnames=("s", "m"))
def mlnet_forward(x, label, params, *, s=30.0, m=0.5):
    """MLNet.forward: returns (x_margin, x_embedd)."""
    B = x.shape[0]
    x_flat = x.reshape(B, -1)
    in_features = x_flat.shape[1]
    w1, b1, w2, b2, w_cls = (params["w1"], params["b1"], params["w2"],
                             params["b2"], params["w_cls"])
    hidden, emb_dim, n_classes = w1.shape[1], w2.shape[1], w_cls.shape[1]

    vmem_limit, tk_max = _tpu_budget()

    # ---- batch tiling: multiples of 16 (bf16 packing); >=2 tiles when possible ----
    if B >= 256:
        tb = 128
    elif B >= 64:
        tb = _round_up((B + 1) // 2, 16)     # >=2 batch tiles -> both v7x TCs busy
    else:
        tb = _round_up(B, 16)
    b_pad = _round_up(B, tb)
    nb = b_pad // tb

    # ---- K tiling: tk divides the 128-aligned K exactly (no dead reduction work) ----
    k_pad = _round_up(in_features, 128)
    tk = _largest_aligned_divisor(k_pad, tk_max)
    nk = k_pad // tk

    h_pad = _round_up(hidden, 128)
    e_pad = _round_up(emb_dim, 128)

    # ---- class tiling for the ArcFace head ----
    tc = min(512, _round_up(n_classes, 128))
    c_pad = _round_up(n_classes, tc)
    nc = c_pad // tc

    # ---- operand prep (cast-only when already aligned; single jnp.pad otherwise) ----
    f32, bf16 = jnp.float32, jnp.bfloat16
    x_p = _pad_cast(x_flat, (b_pad, k_pad), bf16)
    w1_p = _pad_cast(w1, (k_pad, h_pad), bf16)
    b1_p = _pad_cast(b1.reshape(1, -1), (1, h_pad), f32)
    w2_p = _pad_cast(w2, (h_pad, e_pad), bf16)
    b2_p = _pad_cast(b2.reshape(1, -1), (1, e_pad), f32)

    # Hoisted class-weight normalization (once per call, f32, outside the kernel).
    w_cls32 = w_cls.astype(f32)
    w_n = w_cls32 * lax.rsqrt(jnp.sum(w_cls32 * w_cls32, axis=0, keepdims=True) + 1e-12)
    wc_p = _pad_cast(w_n, (e_pad, c_pad), bf16)

    # Labels: tiny lane-dense (b_pad, 128) i32 tile; padded rows get -1 (never match).
    lbl_full = jnp.full((b_pad,), -1, jnp.int32).at[:B].set(label.astype(jnp.int32))
    lbl_tile = jnp.broadcast_to(lbl_full[:, None], (b_pad, 128))

    kernel = functools.partial(
        _mlnet_kernel, nk=nk, tc=tc, s=float(s),
        cos_m=math.cos(m), sin_m=math.sin(m),
        th=math.cos(math.pi - m), mm=math.sin(math.pi - m) * m)

    last_k = nk - 1

    emb_p, mar_p = pl.pallas_call(
        kernel,
        out_shape=(jax.ShapeDtypeStruct((b_pad, e_pad), f32),
                   jax.ShapeDtypeStruct((b_pad, c_pad), f32)),
        grid_spec=pltpu.PrefetchScalarGridSpec(
            num_scalar_prefetch=0,
            grid=(nb, nk + nc),
            in_specs=[
                # x / w1: K-tiled during phase 1, index frozen during phase 2 (no refetch)
                pl.BlockSpec((tb, tk), lambda b, t: (b, jnp.minimum(t, last_k))),
                pl.BlockSpec((tk, h_pad), lambda b, t: (jnp.minimum(t, last_k), 0)),
                pl.BlockSpec((1, h_pad), lambda b, t: (0, 0)),       # b1 (resident)
                pl.BlockSpec((h_pad, e_pad), lambda b, t: (0, 0)),   # w2 (resident)
                pl.BlockSpec((1, e_pad), lambda b, t: (0, 0)),       # b2 (resident)
                # w_cls: class-tiled, streamed only during phase 2
                pl.BlockSpec((e_pad, tc), lambda b, t: (0, jnp.maximum(t - nk, 0))),
                pl.BlockSpec((tb, 128), lambda b, t: (b, 0)),        # labels (tiny)
            ],
            out_specs=[
                pl.BlockSpec((tb, e_pad), lambda b, t: (b, 0)),      # embeddings
                pl.BlockSpec((tb, tc), lambda b, t: (b, jnp.maximum(t - nk, 0))),
            ],
            scratch_shapes=[
                pltpu.VMEM((tb, h_pad), f32),    # first-matmul accumulator
                pltpu.VMEM((tb, e_pad), bf16),   # L2-normalized embeddings carry
            ],
        ),
        compiler_params=pltpu.CompilerParams(
            dimension_semantics=("parallel", "arbitrary"),
            vmem_limit_bytes=vmem_limit),
    )(x_p, w1_p, b1_p, w2_p, b2_p, wc_p, lbl_tile)

    x_embedd = emb_p[:B, :emb_dim]
    x_margin = mar_p[:B, :n_classes]
    return x_margin, x_embedd


def init_params(key, in_features, hidden, emb_dim, n_classes):
    k1, k2, k3 = jax.random.split(key, 3)
    return {
        "w1": jax.random.normal(k1, (in_features, hidden), jnp.float32) / jnp.sqrt(in_features),
        "b1": jnp.zeros((1, hidden), jnp.float32),
        "w2": jax.random.normal(k2, (hidden, emb_dim), jnp.float32) / jnp.sqrt(hidden),
        "b2": jnp.zeros((1, emb_dim), jnp.float32),
        "w_cls": jax.random.normal(k3, (emb_dim, n_classes), jnp.float32) / jnp.sqrt(emb_dim),
    }


if __name__ == "__main__":
    B, C, H, W = 8, 4, 16, 16          # NCHW input
    HIDDEN, EMB_DIM, N_CLASSES = 128, 128, 16

    key = jax.random.PRNGKey(0)
    kx, kp = jax.random.split(key)
    x = jax.random.normal(kx, (B, C, H, W), jnp.float32)
    label = (jnp.arange(B) % N_CLASSES).astype(jnp.int32)

    params = init_params(kp, C * H * W, HIDDEN, EMB_DIM, N_CLASSES)

    x_margin, x_embedd = mlnet_forward(x, label, params)
    jax.block_until_ready((x_margin, x_embedd))

    assert x_margin.shape == (B, N_CLASSES)
    assert x_embedd.shape == (B, EMB_DIM)
    assert bool(jnp.all(jnp.isfinite(x_margin))) and bool(jnp.all(jnp.isfinite(x_embedd)))
    print("KERNEL_OK")
</pallas_src>

<mosaic_0001>
module attributes {stable_mosaic.version = 11 : i64} {
  func.func @_mlnet_kernel(%arg0: i32, %arg1: i32, %arg2: memref<16x1024xbf16, #tpu.memory_space<vmem>>, %arg3: memref<1024x128xbf16, #tpu.memory_space<vmem>>, %arg4: memref<1x128xf32, #tpu.memory_space<vmem>>, %arg5: memref<128x128xbf16, #tpu.memory_space<vmem>>, %arg6: memref<1x128xf32, #tpu.memory_space<vmem>>, %arg7: memref<128x128xbf16, #tpu.memory_space<vmem>>, %arg8: memref<16x128xi32, #tpu.memory_space<vmem>>, %arg9: memref<16x128xf32, #tpu.memory_space<vmem>>, %arg10: memref<16x128xf32, #tpu.memory_space<vmem>>, %arg11: memref<16x128xf32, #tpu.memory_space<vmem>>, %arg12: memref<16x128xbf16, #tpu.memory_space<vmem>>) attributes {dimension_semantics = [#tpu.dimension_semantics<parallel>, #tpu.dimension_semantics<arbitrary>], iteration_bounds = array<i64: 1, 2>, scalar_prefetch = 0 : i64, scratch_operands = 2 : i64, tpu.core_type = #tpu.core_type<tc>, window_params = [{transform_indices = @transform_0, window_bounds = array<i64: 16, 1024>}, {transform_indices = @transform_1, window_bounds = array<i64: 1024, 128>}, {pipeline_mode = #tpu.pipeline_mode<synchronous>, transform_indices = @transform_2, window_bounds = array<i64: 1, 128>}, {pipeline_mode = #tpu.pipeline_mode<synchronous>, transform_indices = @transform_3, window_bounds = array<i64: 128, 128>}, {pipeline_mode = #tpu.pipeline_mode<synchronous>, transform_indices = @transform_4, window_bounds = array<i64: 1, 128>}, {transform_indices = @transform_5, window_bounds = array<i64: 128, 128>}, {transform_indices = @transform_6, window_bounds = array<i64: 16, 128>}, {transform_indices = @transform_7, window_bounds = array<i64: 16, 128>}, {transform_indices = @transform_8, window_bounds = array<i64: 16, 128>}]} {
    %c0_i32 = arith.constant 0 : i32
    %0 = arith.cmpi eq, %arg1, %c0_i32 : i32
    %1 = arith.extui %0 : i1 to i32
    %c0_i32_0 = arith.constant 0 : i32
    %2 = arith.cmpi ne, %1, %c0_i32_0 : i32
    scf.if %2 {
      %cst = arith.constant 0.000000e+00 : f32
      %12 = vector.broadcast %cst : f32 to vector<16x128xf32>
      %c0 = arith.constant 0 : index
      %c0_6 = arith.constant 0 : index
      %13 = vector.load %arg11[%c0, %c0_6] : memref<16x128xf32, #tpu.memory_space<vmem>>, vector<16x128xf32>
      tpu.vector_store %arg11[%c0, %c0_6], %12 {strides = array<i32>} : memref<16x128xf32, #tpu.memory_space<vmem>>, vector<16x128xf32>,
    } else {
    }
    %c1_i32 = arith.constant 1 : i32
    %3 = arith.cmpi slt, %arg1, %c1_i32 : i32
    %4 = arith.extui %3 : i1 to i32
    %c0_i32_1 = arith.constant 0 : i32
    %5 = arith.cmpi ne, %4, %c0_i32_1 : i32
    scf.if %5 {
      %c0 = arith.constant 0 : index
      %c0_6 = arith.constant 0 : index
      %12 = vector.load %arg11[%c0, %c0_6] : memref<16x128xf32, #tpu.memory_space<vmem>>, vector<16x128xf32>
      %c0_7 = arith.constant 0 : index
      %c0_8 = arith.constant 0 : index
      %13 = vector.load %arg2[%c0_7, %c0_8] : memref<16x1024xbf16, #tpu.memory_space<vmem>>, vector<16x1024xbf16>
      %c0_9 = arith.constant 0 : index
      %c0_10 = arith.constant 0 : index
      %14 = vector.load %arg3[%c0_9, %c0_10] : memref<1024x128xbf16, #tpu.memory_space<vmem>>, vector<1024x128xbf16>
      %cst = arith.constant dense<0.000000e+00> : vector<16x128xf32>
      %15 = tpu.matmul %13, %14, %cst {dimension_numbers = #tpu.dot_dimension_numbers<[1], [0], [0], [1], [0, 0, 1, 1], [], []>} : vector<16x1024xbf16>, vector<1024x128xbf16>, vector<16x128xf32> -> vector<16x128xf32>
      %16 = arith.addf %12, %15 : vector<16x128xf32>
      %c0_11 = arith.constant 0 : index
      %c0_12 = arith.constant 0 : index
      %17 = vector.load %arg11[%c0_11, %c0_12] : memref<16x128xf32, #tpu.memory_space<vmem>>, vector<16x128xf32>
      tpu.vector_store %arg11[%c0_11, %c0_12], %16 {strides = array<i32>} : memref<16x128xf32, #tpu.memory_space<vmem>>, vector<16x128xf32>,
    } else {
    }
    %c0_i32_2 = arith.constant 0 : i32
    %6 = arith.cmpi eq, %arg1, %c0_i32_2 : i32
    %7 = arith.extui %6 : i1 to i32
    %c0_i32_3 = arith.constant 0 : i32
    %8 = arith.cmpi ne, %7, %c0_i32_3 : i32
    scf.if %8 {
      %c0 = arith.constant 0 : index
      %c0_6 = arith.constant 0 : index
      %12 = vector.load %arg11[%c0, %c0_6] : memref<16x128xf32, #tpu.memory_space<vmem>>, vector<16x128xf32>
      %c0_7 = arith.constant 0 : index
      %c0_8 = arith.constant 0 : index
      %13 = vector.load %arg4[%c0_7, %c0_8] : memref<1x128xf32, #tpu.memory_space<vmem>>, vector<1x128xf32>
      %14 = vector.broadcast %13 : vector<1x128xf32> to vector<16x128xf32>
      %15 = arith.addf %12, %14 : vector<16x128xf32>
      %cst = arith.constant 0.000000e+00 : f32
      %16 = vector.broadcast %cst : f32 to vector<16x128xf32>
      %17 = arith.maximumf %15, %16 : vector<16x128xf32>
      %18 = arith.truncf %17 : vector<16x128xf32> to vector<16x128xbf16>
      %c0_9 = arith.constant 0 : index
      %c0_10 = arith.constant 0 : index
      %19 = vector.load %arg5[%c0_9, %c0_10] : memref<128x128xbf16, #tpu.memory_space<vmem>>, vector<128x128xbf16>
      %cst_11 = arith.constant dense<0.000000e+00> : vector<16x128xf32>
      %20 = tpu.matmul %18, %19, %cst_11 {dimension_numbers = #tpu.dot_dimension_numbers<[1], [0], [0], [1], [0, 0, 1, 1], [], []>} : vector<16x128xbf16>, vector<128x128xbf16>, vector<16x128xf32> -> vector<16x128xf32>
      %c0_12 = arith.constant 0 : index
      %c0_13 = arith.constant 0 : index
      %21 = vector.load %arg6[%c0_12, %c0_13] : memref<1x128xf32, #tpu.memory_space<vmem>>, vector<1x128xf32>
      %22 = vector.broadcast %21 : vector<1x128xf32> to vector<16x128xf32>
      %23 = arith.addf %20, %22 : vector<16x128xf32>
      %c0_14 = arith.constant 0 : index
      %c0_15 = arith.constant 0 : index
      %24 = vector.load %arg9[%c0_14, %c0_15] : memref<16x128xf32, #tpu.memory_space<vmem>>, vector<16x128xf32>
      tpu.vector_store %arg9[%c0_14, %c0_15], %23 {strides = array<i32>} : memref<16x128xf32, #tpu.memory_space<vmem>>, vector<16x128xf32>,
      %25 = arith.mulf %23, %23 : vector<16x128xf32>
      %cst_16 = arith.constant dense<0.000000e+00> : vector<16xf32>
      %26 = vector.multi_reduction <add>, %25, %cst_16 [1] : vector<16x128xf32> to vector<16xf32>
      %27 = vector.shape_cast %26 : vector<16xf32> to vector<16x1xf32>
      %cst_17 = arith.constant 9.99999996E-13 : f32
      %28 = vector.broadcast %cst_17 : f32 to vector<16x1xf32>
      %29 = arith.addf %27, %28 : vector<16x1xf32>
      %30 = math.rsqrt %29 : vector<16x1xf32>
      %31 = vector.broadcast %30 : vector<16x1xf32> to vector<16x128xf32>
      %32 = arith.mulf %23, %31 : vector<16x128xf32>
      %33 = arith.truncf %32 : vector<16x128xf32> to vector<16x128xbf16>
      %c0_18 = arith.constant 0 : index
      %c0_19 = arith.constant 0 : index
      %34 = vector.load %arg12[%c0_18, %c0_19] : memref<16x128xbf16, #tpu.memory_space<vmem>>, vector<16x128xbf16>
      tpu.vector_store %arg12[%c0_18, %c0_19], %33 {strides = array<i32>} : memref<16x128xbf16, #tpu.memory_space<vmem>>, vector<16x128xbf16>,
    } else {
    }
    %c1_i32_4 = arith.constant 1 : i32
    %9 = arith.cmpi sge, %arg1, %c1_i32_4 : i32
    %10 = arith.extui %9 : i1 to i32
    %c0_i32_5 = arith.constant 0 : i32
    %11 = arith.cmpi ne, %10, %c0_i32_5 : i32
    scf.if %11 {
      %c1_i32_6 = arith.constant 1 : i32
      %12 = arith.subi %arg1, %c1_i32_6 : i32
      %c0 = arith.constant 0 : index
      %c0_7 = arith.constant 0 : index
      %13 = vector.load %arg12[%c0, %c0_7] : memref<16x128xbf16, #tpu.memory_space<vmem>>, vector<16x128xbf16>
      %c0_8 = arith.constant 0 : index
      %c0_9 = arith.constant 0 : index
      %14 = vector.load %arg7[%c0_8, %c0_9] : memref<128x128xbf16, #tpu.memory_space<vmem>>, vector<128x128xbf16>
      %cst = arith.constant dense<0.000000e+00> : vector<16x128xf32>
      %15 = tpu.matmul %13, %14, %cst {dimension_numbers = #tpu.dot_dimension_numbers<[1], [0], [0], [1], [0, 0, 1, 1], [], []>} : vector<16x128xbf16>, vector<128x128xbf16>, vector<16x128xf32> -> vector<16x128xf32>
      %cst_10 = arith.constant -1.000000e+00 : f32
      %cst_11 = arith.constant 1.000000e+00 : f32
      %16 = vector.broadcast %cst_10 : f32 to vector<16x128xf32>
      %17 = arith.maximumf %16, %15 : vector<16x128xf32>
      %18 = vector.broadcast %cst_11 : f32 to vector<16x128xf32>
      %19 = arith.minimumf %18, %17 : vector<16x128xf32>
      %20 = arith.mulf %19, %19 : vector<16x128xf32>
      %cst_12 = arith.constant 1.000000e+00 : f32
      %21 = vector.broadcast %cst_12 : f32 to vector<16x128xf32>
      %22 = arith.subf %21, %20 : vector<16x128xf32>
      %cst_13 = arith.constant 0.000000e+00 : f32
      %23 = vector.broadcast %cst_13 : f32 to vector<16x128xf32>
      %24 = arith.maximumf %22, %23 : vector<16x128xf32>
      %25 = math.sqrt %24 : vector<16x128xf32>
      %cst_14 = arith.constant 0.87758255 : f32
      %26 = vector.broadcast %cst_14 : f32 to vector<16x128xf32>
      %27 = arith.mulf %19, %26 : vector<16x128xf32>
      %cst_15 = arith.constant 0.47942555 : f32
      %28 = vector.broadcast %cst_15 : f32 to vector<16x128xf32>
      %29 = arith.mulf %25, %28 : vector<16x128xf32>
      %30 = arith.subf %27, %29 : vector<16x128xf32>
      %cst_16 = arith.constant -0.87758255 : f32
      %31 = vector.broadcast %cst_16 : f32 to vector<16x128xf32>
      %32 = arith.cmpf ogt, %19, %31 : vector<16x128xf32>
      %cst_17 = arith.constant 0.239712775 : f32
      %33 = vector.broadcast %cst_17 : f32 to vector<16x128xf32>
      %34 = arith.subf %19, %33 : vector<16x128xf32>
      %35 = arith.select %32, %30, %34 : vector<16x128xi1>, vector<16x128xf32>
      %c0_18 = arith.constant 0 : index
      %c0_19 = arith.constant 0 : index
      %36 = vector.load %arg8[%c0_18, %c0_19] : memref<16x128xi32, #tpu.memory_space<vmem>>, vector<16x128xi32>
      %37 = vector.extract_strided_slice %36 {offsets = [0, 0], sizes = [16, 1], strides = [1, 1]} : vector<16x128xi32> to vector<16x1xi32>
      %38 = tpu.iota {dimensions = array<i32: 1>} : vector<16x128xi32>
      %c128_i32 = arith.constant 128 : i32
      %39 = arith.muli %12, %c128_i32 : i32
      %40 = vector.broadcast %39 : i32 to vector<16x128xi32>
      %41 = arith.addi %38, %40 : vector<16x128xi32>
      %42 = vector.broadcast %37 : vector<16x1xi32> to vector<16x128xi32>
      %43 = arith.cmpi eq, %41, %42 : vector<16x128xi32>
      %44 = arith.select %43, %35, %19 : vector<16x128xi1>, vector<16x128xf32>
      %cst_20 = arith.constant 3.000000e+01 : f32
      %45 = vector.broadcast %cst_20 : f32 to vector<16x128xf32>
      %46 = arith.mulf %45, %44 : vector<16x128xf32>
      %c0_21 = arith.constant 0 : index
      %c0_22 = arith.constant 0 : index
      %47 = vector.load %arg10[%c0_21, %c0_22] : memref<16x128xf32, #tpu.memory_space<vmem>>, vector<16x128xf32>
      tpu.vector_store %arg10[%c0_21, %c0_22], %46 {strides = array<i32>} : memref<16x128xf32, #tpu.memory_space<vmem>>, vector<16x128xf32>,
    } else {
    }
    return
  }
  func.func @transform_0(%arg0: i32, %arg1: i32) -> (i32, i32) {
    %c0_i32 = arith.constant 0 : i32
    %0 = arith.minsi %arg1, %c0_i32 : i32
    %c0_i32_0 = arith.constant 0 : i32
    return %arg0, %0 : i32, i32
  }
  func.func @transform_1(%arg0: i32, %arg1: i32) -> (i32, i32) {
    %c0_i32 = arith.constant 0 : i32
    %0 = arith.minsi %arg1, %c0_i32 : i32
    %c0_i32_0 = arith.constant 0 : i32
    %c0_i32_1 = arith.constant 0 : i32
    return %0, %c0_i32_0 : i32, i32
  }
  func.func @transform_2(%arg0: i32, %arg1: i32) -> (i32, i32) {
    %c0_i32 = arith.constant 0 : i32
    %c0_i32_0 = arith.constant 0 : i32
    %c0_i32_1 = arith.constant 0 : i32
    return %c0_i32, %c0_i32_0 : i32, i32
  }
  func.func @transform_3(%arg0: i32, %arg1: i32) -> (i32, i32) {
    %c0_i32 = arith.constant 0 : i32
    %c0_i32_0 = arith.constant 0 : i32
    %c0_i32_1 = arith.constant 0 : i32
    return %c0_i32, %c0_i32_0 : i32, i32
  }
  func.func @transform_4(%arg0: i32, %arg1: i32) -> (i32, i32) {
    %c0_i32 = arith.constant 0 : i32
    %c0_i32_0 = arith.constant 0 : i32
    %c0_i32_1 = arith.constant 0 : i32
    return %c0_i32, %c0_i32_0 : i32, i32
  }
  func.func @transform_5(%arg0: i32, %arg1: i32) -> (i32, i32) {
    %c1_i32 = arith.constant 1 : i32
    %0 = arith.subi %arg1, %c1_i32 : i32
    %c0_i32 = arith.constant 0 : i32
    %1 = arith.maxsi %0, %c0_i32 : i32
    %c0_i32_0 = arith.constant 0 : i32
    %c0_i32_1 = arith.constant 0 : i32
    return %c0_i32_0, %1 : i32, i32
  }
  func.func @transform_6(%arg0: i32, %arg1: i32) -> (i32, i32) {
    %c0_i32 = arith.constant 0 : i32
    %c0_i32_0 = arith.constant 0 : i32
    return %arg0, %c0_i32 : i32, i32
  }
  func.func @transform_7(%arg0: i32, %arg1: i32) -> (i32, i32) {
    %c0_i32 = arith.constant 0 : i32
    %c0_i32_0 = arith.constant 0 : i32
    return %arg0, %c0_i32 : i32, i32
  }
  func.func @transform_8(%arg0: i32, %arg1: i32) -> (i32, i32) {
    %c1_i32 = arith.constant 1 : i32
    %0 = arith.subi %arg1, %c1_i32 : i32
    %c0_i32 = arith.constant 0 : i32
    %1 = arith.maxsi %0, %c0_i32 : i32
    %c0_i32_0 = arith.constant 0 : i32
    return %arg0, %1 : i32, i32
  }
}

</mosaic_0001>

<llo_original>
// kernel: mlnet_forward.1
$region0: #{mlnet_forward.1}
  #allocation0 [shape = 'u32[]', space=smem, size = 0x4, offset = 0x4, fixed_abs, tag = 'smem constant byte address 0x4 - core index']
  #allocation1 [shape = 'u32[144,128]{1,0:T(1,128)}', space=vmem, size = 0x12000, scoped, tag = 'internal scratch']
  #allocation2 [shape = 'f32[16,128]{1,0:T(8,128)}', space=vmem, size = 0x2000, scoped, tag = 'scratch operand']
  #allocation3 [shape = 'bf16[16,128]{1,0:T(16,128)(2,1)}', space=vmem, size = 0x1000, scoped, tag = 'scratch operand']
  %s0 = inlined_call_operand.vmem [shape: bf16[16,1024], index: 0, kind: input, shape index: {}]
  %s1 = inlined_call_operand.vmem [shape: bf16[1024,128], index: 1, kind: input, shape index: {}]
  %s2 = inlined_call_operand.vmem [shape: f32[1,128], index: 2, kind: input, shape index: {}]
  %s3 = inlined_call_operand.vmem [shape: bf16[128,128], index: 3, kind: input, shape index: {}]
  %s4 = inlined_call_operand.vmem [shape: f32[1,128], index: 4, kind: input, shape index: {}]
  %s5 = inlined_call_operand.vmem [shape: bf16[128,128], index: 5, kind: input, shape index: {}]
  %s6 = inlined_call_operand.vmem [shape: s32[16,128], index: 6, kind: input, shape index: {}]
  %s7 = inlined_call_operand.vmem [shape: f32[16,128], index: 7, kind: output, shape index: {0}]
  %s8 = inlined_call_operand.vmem [shape: f32[16,128], index: 8, kind: output, shape index: {1}]
  %9 = xla_tuple %s7, %s8
  %s10 = sld [smem:[#allocation0]]
  $region85: #{mlnet_forward.1} parent=0
    _
  %s12 = ssub.s32 1, %s10
  %s13 = scalar_select 0, %s12, %s10
  loop: start=0, step=1, limit=4
  $region2: #{mlnet_forward.1} parent=0 // loop_pre_header
    _
  $region3: #{mlnet_forward.1} parent=0 // loop_header
    %s15 = sphi 0, %s19
    %p16 = scmp.ge.s32.totalorder %s15, 4
    %s22 = sphi 0, %s34
    %s23 = sphi 0, %s30
    %s24 = sphi 0, %s22
    %s25 = sphi 0, %s23
    %s26 = sphi 0, %s24
    %s27 = sphi 0, %s25
    %s43 = sphi 0, %s45
    %s46 = sphi 0, %s43
    %s47 = sphi 0, %s46
    %s63 = sphi 0, %s47
    %s73 = sphi 0, %s75
    %s76 = sphi 0, %s73
    %s77 = sphi 0, %s76
    %s93 = sphi 0, %s77
    %s97 = sphi 0, %s97
    %s99 = sphi 0, %s97
    %s100 = sphi 0, %s99
    %s114 = sphi 0, %s100
    %s118 = sphi 0, %s118
    %s120 = sphi 0, %s118
    %s121 = sphi 0, %s120
    %s135 = sphi 0, %s121
    %s139 = sphi 0, %s139
    %s141 = sphi 0, %s139
    %s142 = sphi 0, %s141
    %s156 = sphi 0, %s142
    %s168 = sphi 0, %s170
    %s171 = sphi 0, %s168
    %s172 = sphi 0, %s171
    %s188 = sphi 0, %s172
    %s194 = sphi 0, %s196
    %s197 = sphi 0, %s194
    %s198 = sphi 0, %s197
    %s214 = sphi 0, %s198
    %s220 = sphi 0, %s222
    %s223 = sphi 0, %s220
    %s224 = sphi 0, %s223
    %s240 = sphi 0, %s224
    %s254 = sphi 0, %s256
    %s257 = sphi 0, %s254
    %s258 = sphi 0, %s257
    %s274 = sphi 0, %s258
  $region4: #{mlnet_forward.1} parent=0 // loop_header_branch
    %18 = sbr.rel (%p16) target = $region8
  $region5: #{mlnet_forward.1} parent=0 // loop_body
    %s20 = ssub.s32 %s15, 1
    %s21 = ssub.s32 %s15, 2
    %s28 = sadd.s32 1, %s23
    %p29 = scmp.ge.s32.totalorder %s28, 2
    %s30 = scalar_select %p29, 0, %s28
    %s31 = sadd.s32 1, %s22
    %s32 = scalar_select %p29, %s31, %s22
    %p33 = scmp.ge.s32.totalorder %s32, 1
    %s34 = scalar_select %p33, 0, %s32
    %p35 = scmp.lt.s32.totalorder %s23, 0
    %s36 = scalar_select %p35, %s23, 0
    %p37 = scmp.lt.s32.totalorder %s30, 0
    %s38 = scalar_select %p37, %s30, 0
    %s39 = ssub.s32 %s22, %s34
    %s40 = ssub.s32 %s36, %s38
    %s41 = sor.u32 %s39, %s40
    %p42 = scmp.eq.s32.totalorder %s41, 0
    %s44 = sadd.s32 %s43, 1
    %s45 = scalar_select %p42, %s43, %s44
    %p48 = pneg %p42
    %p49 = scmp.eq.s32.totalorder %s15, 1
    %p50 = por %p48, %p49
    %p51 = scmp.ne.s32.totalorder %s43, %s46
    %p52 = scmp.eq.s32.totalorder %s15, 0
    %p53 = por %p51, %p52
    %p54 = scmp.ne.s32.totalorder %s43, %s46
    %p55 = scmp.eq.s32.totalorder %s20, 1
    %p56 = por %p54, %p55
    %p57 = scmp.ne.s32.totalorder %s46, %s47
    %p58 = scmp.eq.s32.totalorder %s20, 0
    %p59 = por %p57, %p58
    %p60 = scmp.ne.s32.totalorder %s46, %s47
    %p61 = scmp.eq.s32.totalorder %s21, 1
    %p62 = por %p60, %p61
    %p64 = scmp.ne.s32.totalorder %s47, %s63
    %p65 = scmp.eq.s32.totalorder %s21, 0
    %p66 = por %p64, %p65
    %p67 = scmp.lt.s32.totalorder %s23, 0
    %s68 = scalar_select %p67, %s23, 0
    %p69 = scmp.lt.s32.totalorder %s30, 0
    %s70 = scalar_select %p69, %s30, 0
    %s71 = ssub.s32 %s68, %s70
    %p72 = scmp.eq.s32.totalorder %s71, 0
    %s74 = sadd.s32 %s73, 1
    %s75 = scalar_select %p72, %s73, %s74
    %p78 = pneg %p72
    %p79 = scmp.eq.s32.totalorder %s15, 1
    %p80 = por %p78, %p79
    %p81 = scmp.ne.s32.totalorder %s73, %s76
    %p82 = scmp.eq.s32.totalorder %s15, 0
    %p83 = por %p81, %p82
    %p84 = scmp.ne.s32.totalorder %s73, %s76
    %p85 = scmp.eq.s32.totalorder %s20, 1
    %p86 = por %p84, %p85
    %p87 = scmp.ne.s32.totalorder %s76, %s77
    %p88 = scmp.eq.s32.totalorder %s20, 0
    %p89 = por %p87, %p88
    %p90 = scmp.ne.s32.totalorder %s76, %s77
    %p91 = scmp.eq.s32.totalorder %s21, 1
    %p92 = por %p90, %p91
    %p94 = scmp.ne.s32.totalorder %s77, %s93
    %p95 = scmp.eq.s32.totalorder %s21, 0
    %p96 = por %p94, %p95
    %s98 = sadd.s32 %s97, 1
    %p101 = scmp.eq.s32.totalorder %s15, 1
    %p102 = scmp.ne.s32.totalorder %s97, %s99
    %p103 = scmp.eq.s32.totalorder %s15, 0
    %p104 = por %p102, %p103
    %p105 = scmp.ne.s32.totalorder %s97, %s99
    %p106 = scmp.eq.s32.totalorder %s20, 1
    %p107 = por %p105, %p106
    %p108 = scmp.ne.s32.totalorder %s99, %s100
    %p109 = scmp.eq.s32.totalorder %s20, 0
    %p110 = por %p108, %p109
    %p111 = scmp.ne.s32.totalorder %s99, %s100
    %p112 = scmp.eq.s32.totalorder %s21, 1
    %p113 = por %p111, %p112
    %p115 = scmp.ne.s32.totalorder %s100, %s114
    %p116 = scmp.eq.s32.totalorder %s21, 0
    %p117 = por %p115, %p116
    %s119 = sadd.s32 %s118, 1
    %p122 = scmp.eq.s32.totalorder %s15, 1
    %p123 = scmp.ne.s32.totalorder %s118, %s120
    %p124 = scmp.eq.s32.totalorder %s15, 0
    %p125 = por %p123, %p124
    %p126 = scmp.ne.s32.totalorder %s118, %s120
    %p127 = scmp.eq.s32.totalorder %s20, 1
    %p128 = por %p126, %p127
    %p129 = scmp.ne.s32.totalorder %s120, %s121
    %p130 = scmp.eq.s32.totalorder %s20, 0
    %p131 = por %p129, %p130
    %p132 = scmp.ne.s32.totalorder %s120, %s121
    %p133 = scmp.eq.s32.totalorder %s21, 1
    %p134 = por %p132, %p133
    %p136 = scmp.ne.s32.totalorder %s121, %s135
    %p137 = scmp.eq.s32.totalorder %s21, 0
    %p138 = por %p136, %p137
    %s140 = sadd.s32 %s139, 1
    %p143 = scmp.eq.s32.totalorder %s15, 1
    %p144 = scmp.ne.s32.totalorder %s139, %s141
    %p145 = scmp.eq.s32.totalorder %s15, 0
    %p146 = por %p144, %p145
    %p147 = scmp.ne.s32.totalorder %s139, %s141
    %p148 = scmp.eq.s32.totalorder %s20, 1
    %p149 = por %p147, %p148
    %p150 = scmp.ne.s32.totalorder %s141, %s142
    %p151 = scmp.eq.s32.totalorder %s20, 0
    %p152 = por %p150, %p151
    %p153 = scmp.ne.s32.totalorder %s141, %s142
    %p154 = scmp.eq.s32.totalorder %s21, 1
    %p155 = por %p153, %p154
    %p157 = scmp.ne.s32.totalorder %s142, %s156
    %p158 = scmp.eq.s32.totalorder %s21, 0
    %p159 = por %p157, %p158
    %s160 = ssub.s32 %s23, 1
    %p161 = scmp.gt.s32.totalorder %s160, 0
    %s162 = scalar_select %p161, %s160, 0
    %s163 = ssub.s32 %s30, 1
    %p164 = scmp.gt.s32.totalorder %s163, 0
    %s165 = scalar_select %p164, %s163, 0
    %s166 = ssub.s32 %s162, %s165
    %p167 = scmp.eq.s32.totalorder %s166, 0
    %s169 = sadd.s32 %s168, 1
    %s170 = scalar_select %p167, %s168, %s169
    %p173 = pneg %p167
    %p174 = scmp.eq.s32.totalorder %s15, 1
    %p175 = por %p173, %p174
    %p176 = scmp.ne.s32.totalorder %s168, %s171
    %p177 = scmp.eq.s32.totalorder %s15, 0
    %p178 = por %p176, %p177
    %p179 = scmp.ne.s32.totalorder %s168, %s171
    %p180 = scmp.eq.s32.totalorder %s20, 1
    %p181 = por %p179, %p180
    %p182 = scmp.ne.s32.totalorder %s171, %s172
    %p183 = scmp.eq.s32.totalorder %s20, 0
    %p184 = por %p182, %p183
    %p185 = scmp.ne.s32.totalorder %s171, %s172
    %p186 = scmp.eq.s32.totalorder %s21, 1
    %p187 = por %p185, %p186
    %p189 = scmp.ne.s32.totalorder %s172, %s188
    %p190 = scmp.eq.s32.totalorder %s21, 0
    %p191 = por %p189, %p190
    %s192 = ssub.s32 %s22, %s34
    %p193 = scmp.eq.s32.totalorder %s192, 0
    %s195 = sadd.s32 %s194, 1
    %s196 = scalar_select %p193, %s194, %s195
    %p199 = pneg %p193
    %p200 = scmp.eq.s32.totalorder %s15, 1
    %p201 = por %p199, %p200
    %p202 = scmp.ne.s32.totalorder %s194, %s197
    %p203 = scmp.eq.s32.totalorder %s15, 0
    %p204 = por %p202, %p203
    %p205 = scmp.ne.s32.totalorder %s194, %s197
    %p206 = scmp.eq.s32.totalorder %s20, 1
    %p207 = por %p205, %p206
    %p208 = scmp.ne.s32.totalorder %s197, %s198
    %p209 = scmp.eq.s32.totalorder %s20, 0
    %p210 = por %p208, %p209
    %p211 = scmp.ne.s32.totalorder %s197, %s198
    %p212 = scmp.eq.s32.totalorder %s21, 1
    %p213 = por %p211, %p212
    %p215 = scmp.ne.s32.totalorder %s198, %s214
    %p216 = scmp.eq.s32.totalorder %s21, 0
    %p217 = por %p215, %p216
    %s218 = ssub.s32 %s22, %s34
    %p219 = scmp.eq.s32.totalorder %s218, 0
    %s221 = sadd.s32 %s220, 1
    %s222 = scalar_select %p219, %s220, %s221
    %p225 = pneg %p219
    %p226 = scmp.eq.s32.totalorder %s15, 1
    %p227 = por %p225, %p226
    %p228 = scmp.ne.s32.totalorder %s220, %s223
    %p229 = scmp.eq.s32.totalorder %s15, 0
    %p230 = por %p228, %p229
    %p231 = scmp.ne.s32.totalorder %s220, %s223
    %p232 = scmp.eq.s32.totalorder %s20, 1
    %p233 = por %p231, %p232
    %p234 = scmp.ne.s32.totalorder %s223, %s224
    %p235 = scmp.eq.s32.totalorder %s20, 0
    %p236 = por %p234, %p235
    %p237 = scmp.ne.s32.totalorder %s223, %s224
    %p238 = scmp.eq.s32.totalorder %s21, 1
    %p239 = por %p237, %p238
    %p241 = scmp.ne.s32.totalorder %s224, %s240
    %p242 = scmp.eq.s32.totalorder %s21, 0
    %p243 = por %p241, %p242
    %s244 = ssub.s32 %s23, 1
    %p245 = scmp.gt.s32.totalorder %s244, 0
    %s246 = scalar_select %p245, %s244, 0
    %s247 = ssub.s32 %s30, 1
    %p248 = scmp.gt.s32.totalorder %s247, 0
    %s249 = scalar_select %p248, %s247, 0
    %s250 = ssub.s32 %s22, %s34
    %s251 = ssub.s32 %s246, %s249
    %s252 = sor.u32 %s250, %s251
    %p253 = scmp.eq.s32.totalorder %s252, 0
    %s255 = sadd.s32 %s254, 1
    %s256 = scalar_select %p253, %s254, %s255
    %p259 = pneg %p253
    %p260 = scmp.eq.s32.totalorder %s15, 1
    %p261 = por %p259, %p260
    %p262 = scmp.ne.s32.totalorder %s254, %s257
    %p263 = scmp.eq.s32.totalorder %s15, 0
    %p264 = por %p262, %p263
    %p265 = scmp.ne.s32.totalorder %s254, %s257
    %p266 = scmp.eq.s32.totalorder %s20, 1
    %p267 = por %p265, %p266
    %p268 = scmp.ne.s32.totalorder %s257, %s258
    %p269 = scmp.eq.s32.totalorder %s20, 0
    %p270 = por %p268, %p269
    %p271 = scmp.ne.s32.totalorder %s257, %s258
    %p272 = scmp.eq.s32.totalorder %s21, 1
    %p273 = por %p271, %p272
    %p275 = scmp.ne.s32.totalorder %s258, %s274
    %p276 = scmp.eq.s32.totalorder %s21, 0
    %p277 = por %p275, %p276
    %p278 = scmp.le.s32.totalorder 1, %s15
    %p279 = scmp.lt.s32.totalorder %s15, 3
    %p280 = pnand %p278, %p279
    %p281 = pneg %p280
    // Predicated region
    $region9: #{mlnet_forward.1} parent=5 // pred_check
      _
    $region10: #{mlnet_forward.1} parent=5 // pred_check_branch
      %283 = sbr.rel (%p280) target = $region12
    $region11: #{mlnet_forward.1} parent=5 // pred_region
      %s284 = ssub.s32 %s15, 1
      // Predicated region
      $region13: #{mlnet_forward.1} parent=11 // pred_check
        %p285 = pneg %p110
      $region14: #{mlnet_forward.1} parent=11 // pred_check_branch
        %287 = sbr.rel (%p285) target = $region16
      $region15: #{mlnet_forward.1} parent=11 // pred_region
        _
      $region16: #{mlnet_forward.1} parent=11 // pred_fallthru
        _
      // Predicated region
      $region17: #{mlnet_forward.1} parent=11 // pred_check
        %p288 = pneg %p131
      $region18: #{mlnet_forward.1} parent=11 // pred_check_branch
        %290 = sbr.rel (%p288) target = $region20
      $region19: #{mlnet_forward.1} parent=11 // pred_region
        _
      $region20: #{mlnet_forward.1} parent=11 // pred_fallthru
        _
      // Predicated region
      $region21: #{mlnet_forward.1} parent=11 // pred_check
        %p291 = pneg %p152
      $region22: #{mlnet_forward.1} parent=11 // pred_check_branch
        %293 = sbr.rel (%p291) target = $region24
      $region23: #{mlnet_forward.1} parent=11 // pred_region
        _
      $region24: #{mlnet_forward.1} parent=11 // pred_fallthru
        _
      // Predicated region
      $region25: #{mlnet_forward.1} parent=11 // pred_check
        %p294 = pneg %p210
      $region26: #{mlnet_forward.1} parent=11 // pred_check_branch
        %296 = sbr.rel (%p294) target = $region28
      $region27: #{mlnet_forward.1} parent=11 // pred_region
        %s297 = smul.u32 2, %s24
        %p298 = scmp.lt.s32.totalorder %s297, 1
        %s299 = scalar_select %p298, %s297, 1
        %s300 = smul.addr %s299, 8
        %s301 = scalar_lea.vmem %s6, %s300
        %s302 = smul.u32 2, %s24
      $region28: #{mlnet_forward.1} parent=11 // pred_fallthru
        _
    $region12: #{mlnet_forward.1} parent=5 // pred_fallthru
      _
    %p303 = scmp.lt.s32.totalorder %s15, 2
    // Predicated region
    $region29: #{mlnet_forward.1} parent=5 // pred_check
      %p304 = pneg %p303
    $region30: #{mlnet_forward.1} parent=5 // pred_check_branch
      %306 = sbr.rel (%p304) target = $region32
    $region31: #{mlnet_forward.1} parent=5 // pred_region
      // Predicated region
      $region33: #{mlnet_forward.1} parent=31 // pred_check
        %p307 = pneg %p53
      $region34: #{mlnet_forward.1} parent=31 // pred_check_branch
        %309 = sbr.rel (%p307) target = $region36
      $region35: #{mlnet_forward.1} parent=31 // pred_region
        %p310 = scmp.lt.s32.totalorder %s23, 0
        %s311 = scalar_select %p310, %s23, 0
        %s312 = smul.u32 2, %s22
        %s313 = smul.u32 8, %s311
        %p314 = scmp.lt.s32.totalorder %s312, 1
        %s315 = scalar_select %p314, %s312, 1
        %p316 = scmp.lt.s32.totalorder %s313, 7
        %s317 = scalar_select %p316, %s313, 7
        %s318 = smul.addr %s315, 8
        %s319 = sadd.s32 %s317, %s318
        %s320 = smul.addr %s319, 4
        %s321 = scalar_lea.vmem %s0, %s320
        %p322 = scmp.lt.s32.totalorder %s23, 0
        %s323 = scalar_select %p322, %s23, 0
        %s324 = smul.u32 2, %s22
        %s325 = smul.u32 8, %s323
      $region36: #{mlnet_forward.1} parent=31 // pred_fallthru
        _
      // Predicated region
      $region37: #{mlnet_forward.1} parent=31 // pred_check
        %p326 = pneg %p83
      $region38: #{mlnet_forward.1} parent=31 // pred_check_branch
        %328 = sbr.rel (%p326) target = $region40
      $region39: #{mlnet_forward.1} parent=31 // pred_region
        %p329 = scmp.lt.s32.totalorder %s23, 0
        %s330 = scalar_select %p329, %s23, 0
        %s331 = smul.u32 128, %s330
        %p332 = scmp.lt.s32.totalorder %s331, 127
        %s333 = scalar_select %p332, %s331, 127
        %s334 = smul.addr %s333, 4
        %s335 = scalar_lea.vmem %s1, %s334
        %p336 = scmp.lt.s32.totalorder %s23, 0
        %s337 = scalar_select %p336, %s23, 0
        %s338 = smul.u32 128, %s337
      $region40: #{mlnet_forward.1} parent=31 // pred_fallthru
        _
      // Predicated region
      $region41: #{mlnet_forward.1} parent=31 // pred_check
        %p339 = pneg %p178
      $region42: #{mlnet_forward.1} parent=31 // pred_check_branch
        %341 = sbr.rel (%p339) target = $region44
      $region43: #{mlnet_forward.1} parent=31 // pred_region
        %s342 = ssub.s32 %s23, 1
        %p343 = scmp.gt.s32.totalorder %s342, 0
        %s344 = scalar_select %p343, %s342, 0
        %p345 = scmp.lt.s32.totalorder %s344, 0
        %s346 = scalar_select %p345, %s344, 0
        %s347 = smul.addr %s346, 4
        %s348 = scalar_lea.vmem %s5, %s347
        %s349 = ssub.s32 %s23, 1
        %p350 = scmp.gt.s32.totalorder %s349, 0
        %s351 = scalar_select %p350, %s349, 0
      $region44: #{mlnet_forward.1} parent=31 // pred_fallthru
        _
    $region32: #{mlnet_forward.1} parent=5 // pred_fallthru
      _
    %p352 = scmp.le.s32.totalorder 1, %s15
    %p353 = scmp.lt.s32.totalorder %s15, 3
    %p354 = pnand %p352, %p353
    %p355 = pneg %p354
    // Predicated region
    $region45: #{mlnet_forward.1} parent=5 // pred_check
      _
    $region46: #{mlnet_forward.1} parent=5 // pred_check_branch
      %357 = sbr.rel (%p354) target = $region48
    $region47: #{mlnet_forward.1} parent=5 // pred_region
      %s358 = ssub.s32 %s15, 1
      %p359 = scmp.lt.s32.totalorder %s25, 0
      %s360 = scalar_select %p359, %s25, 0
      %s361 = smul.u32 2, %s24
      %s362 = smul.u32 8, %s360
      %p363 = scmp.lt.s32.totalorder %s361, 1
      %s364 = scalar_select %p363, %s361, 1
      %p365 = scmp.lt.s32.totalorder %s362, 7
      %s366 = scalar_select %p365, %s362, 7
      %s367 = smul.addr %s364, 8
      %s368 = sadd.s32 %s366, %s367
      %s369 = smul.addr %s368, 4
      %s370 = scalar_lea.vmem %s0, %s369
      %p371 = pneg %p59
      %p372 = pneg %p56
      %p373 = scmp.lt.s32.totalorder %s25, 0
      %s374 = scalar_select %p373, %s25, 0
      %s375 = smul.u32 128, %s374
      %p376 = scmp.lt.s32.totalorder %s375, 127
      %s377 = scalar_select %p376, %s375, 127
      %s378 = smul.addr %s377, 4
      %s379 = scalar_lea.vmem %s1, %s378
      %p380 = pneg %p89
      %p381 = pneg %p86
      %p382 = pneg %p110
      %p383 = pneg %p107
      %p384 = pneg %p131
      %p385 = pneg %p128
      %p386 = pneg %p152
      %p387 = pneg %p149
      %s388 = ssub.s32 %s25, 1
      %p389 = scmp.gt.s32.totalorder %s388, 0
      %s390 = scalar_select %p389, %s388, 0
      %p391 = scmp.lt.s32.totalorder %s390, 0
      %s392 = scalar_select %p391, %s390, 0
      %s393 = smul.addr %s392, 4
      %s394 = scalar_lea.vmem %s5, %s393
      %p395 = pneg %p184
      %p396 = pneg %p181
      %s397 = smul.u32 2, %s24
      %p398 = scmp.lt.s32.totalorder %s397, 1
      %s399 = scalar_select %p398, %s397, 1
      %s400 = smul.addr %s399, 8
      %s401 = scalar_lea.vmem %s6, %s400
      %p402 = pneg %p210
      %p403 = pneg %p207
      %p404 = pneg %p236
      %p405 = pneg %p233
      %s406 = smul.u32 2, %s24
      %p407 = scmp.lt.s32.totalorder %s406, 1
      %s408 = scalar_select %p407, %s406, 1
      %s409 = smul.addr %s408, 8
      %s410 = scalar_lea.vmem %s7, %s409
      %p411 = pneg %p270
      %p412 = pneg %p267
      %s413 = ssub.s32 %s25, 1
      %p414 = scmp.gt.s32.totalorder %s413, 0
      %s415 = scalar_select %p414, %s413, 0
      %s416 = smul.u32 2, %s24
      %p417 = scmp.lt.s32.totalorder %s416, 1
      %s418 = scalar_select %p417, %s416, 1
      %p419 = scmp.lt.s32.totalorder %s415, 0
      %s420 = scalar_select %p419, %s415, 0
      %s421 = sadd.s32 %s420, %s418
      %s422 = smul.addr %s421, 8
      %s423 = scalar_lea.vmem %s8, %s422
      %p424 = scmp.lt.s32.totalorder %s25, 0
      %s425 = scalar_select %p424, %s25, 0
      %s426 = smul.u32 2, %s24
      %s427 = smul.u32 8, %s425
      %p428 = scmp.lt.s32.totalorder %s426, 1
      %s429 = scalar_select %p428, %s426, 1
      %p430 = scmp.lt.s32.totalorder %s427, 7
      %s431 = scalar_select %p430, %s427, 7
      %s432 = smul.addr %s429, 8
      %s433 = sadd.s32 %s431, %s432
      %s434 = smul.addr %s433, 4
      %s435 = scalar_lea.vmem %s0, %s434
      %p436 = scmp.lt.s32.totalorder %s25, 0
      %s437 = scalar_select %p436, %s25, 0
      %s438 = smul.u32 2, %s24
      %s439 = smul.u32 8, %s437
      %p440 = scmp.lt.s32.totalorder %s25, 0
      %s441 = scalar_select %p440, %s25, 0
      %s442 = smul.u32 128, %s441
      %p443 = scmp.lt.s32.totalorder %s442, 127
      %s444 = scalar_select %p443, %s442, 127
      %s445 = smul.addr %s444, 4
      %s446 = scalar_lea.vmem %s1, %s445
      %p447 = scmp.lt.s32.totalorder %s25, 0
      %s448 = scalar_select %p447, %s25, 0
      %s449 = smul.u32 128, %s448
      %s450 = ssub.s32 %s25, 1
      %p451 = scmp.gt.s32.totalorder %s450, 0
      %s452 = scalar_select %p451, %s450, 0
      %p453 = scmp.lt.s32.totalorder %s452, 0
      %s454 = scalar_select %p453, %s452, 0
      %s455 = smul.addr %s454, 4
      %s456 = scalar_lea.vmem %s5, %s455
      %s457 = ssub.s32 %s25, 1
      %p458 = scmp.gt.s32.totalorder %s457, 0
      %s459 = scalar_select %p458, %s457, 0
      %s460 = smul.u32 2, %s24
      %p461 = scmp.lt.s32.totalorder %s460, 1
      %s462 = scalar_select %p461, %s460, 1
      %s463 = smul.addr %s462, 8
      %s464 = scalar_lea.vmem %s6, %s463
      %s465 = smul.u32 2, %s24
      %s466 = smul.u32 2, %s24
      %p467 = scmp.lt.s32.totalorder %s466, 1
      %s468 = scalar_select %p467, %s466, 1
      %s469 = smul.addr %s468, 8
      %s470 = scalar_lea.vmem %s7, %s469
      %s471 = smul.u32 2, %s24
      %s472 = ssub.s32 %s25, 1
      %p473 = scmp.gt.s32.totalorder %s472, 0
      %s474 = scalar_select %p473, %s472, 0
      %s475 = smul.u32 2, %s24
      %p476 = scmp.lt.s32.totalorder %s475, 1
      %s477 = scalar_select %p476, %s475, 1
      %p478 = scmp.lt.s32.totalorder %s474, 0
      %s479 = scalar_select %p478, %s474, 0
      %s480 = sadd.s32 %s479, %s477
      %s481 = smul.addr %s480, 8
      %s482 = scalar_lea.vmem %s8, %s481
      %s483 = ssub.s32 %s25, 1
      %p484 = scmp.gt.s32.totalorder %s483, 0
      %s485 = scalar_select %p484, %s483, 0
      %s486 = smul.u32 2, %s24
      %p488 = scmp.eq.s32.totalorder %s25, 0
      // Predicated region
      $region49: #{mlnet_forward.1} parent=47 // pred_check
        %p489 = pneg %p488
      $region50: #{mlnet_forward.1} parent=47 // pred_check_branch
        %491 = sbr.rel (%p489) target = $region52
      $region51: #{mlnet_forward.1} parent=47 // pred_region
        %492 = vst [vmem:[#allocation2] sm:$0xff] 0.0
        %493 = vst [vmem:[#allocation2 + $0x8] sm:$0xff] 0.0
      $region52: #{mlnet_forward.1} parent=47 // pred_fallthru
        _
      %p494 = scmp.lt.s32.totalorder %s25, 1
      // Predicated region
      $region53: #{mlnet_forward.1} parent=47 // pred_check
        %p495 = pneg %p494
      $region54: #{mlnet_forward.1} parent=47 // pred_check_branch
        %497 = sbr.rel (%p495) target = $region56
      $region55: #{mlnet_forward.1} parent=47 // pred_region
        %v498 = vld [vmem:[#allocation2] sm:$0xff]
        %v499 = vld [vmem:[#allocation2 + $0x8] sm:$0xff]
        %v500 = vld [vmem:[%s435] sm:$0xff]
        %v501 = vld [vmem:[%s435 + $0x8] sm:$0xff]
        %v502 = vld [vmem:[%s435 + $0x10] sm:$0xff]
        %v503 = vld [vmem:[%s435 + $0x18] sm:$0xff]
        %v504 = vld [vmem:[%s435 + $0x20] sm:$0xff]
        %v505 = vld [vmem:[%s435 + $0x28] sm:$0xff]
        %v506 = vld [vmem:[%s435 + $0x30] sm:$0xff]
        %v507 = vld [vmem:[%s435 + $0x38] sm:$0xff]
        %v508 = vld [vmem:[%s446] sm:$0xf]
        %v509 = vld [vmem:[%s446 + $0x4] sm:$0xf]
        %v510 = vld [vmem:[%s446 + $0x8] sm:$0xf]
        %v511 = vld [vmem:[%s446 + $0xc] sm:$0xf]
        %v512 = vld [vmem:[%s446 + $0x10] sm:$0xf]
        %v513 = vld [vmem:[%s446 + $0x14] sm:$0xf]
        %v514 = vld [vmem:[%s446 + $0x18] sm:$0xf]
        %v515 = vld [vmem:[%s446 + $0x1c] sm:$0xf]
        %v516 = vld [vmem:[%s446 + $0x20] sm:$0xf]
        %v517 = vld [vmem:[%s446 + $0x24] sm:$0xf]
        %v518 = vld [vmem:[%s446 + $0x28] sm:$0xf]
        %v519 = vld [vmem:[%s446 + $0x2c] sm:$0xf]
        %v520 = vld [vmem:[%s446 + $0x30] sm:$0xf]
        %v521 = vld [vmem:[%s446 + $0x34] sm:$0xf]
        %v522 = vld [vmem:[%s446 + $0x38] sm:$0xf]
        %v523 = vld [vmem:[%s446 + $0x3c] sm:$0xf]
        %v524 = vld [vmem:[%s446 + $0x40] sm:$0xf]
        %v525 = vld [vmem:[%s446 + $0x44] sm:$0xf]
        %v526 = vld [vmem:[%s446 + $0x48] sm:$0xf]
        %v527 = vld [vmem:[%s446 + $0x4c] sm:$0xf]
        %v528 = vld [vmem:[%s446 + $0x50] sm:$0xf]
        %v529 = vld [vmem:[%s446 + $0x54] sm:$0xf]
        %v530 = vld [vmem:[%s446 + $0x58] sm:$0xf]
        %v531 = vld [vmem:[%s446 + $0x5c] sm:$0xf]
        %v532 = vld [vmem:[%s446 + $0x60] sm:$0xf]
        %v533 = vld [vmem:[%s446 + $0x64] sm:$0xf]
        %v534 = vld [vmem:[%s446 + $0x68] sm:$0xf]
        %v535 = vld [vmem:[%s446 + $0x6c] sm:$0xf]
        %v536 = vld [vmem:[%s446 + $0x70] sm:$0xf]
        %v537 = vld [vmem:[%s446 + $0x74] sm:$0xf]
        %v538 = vld [vmem:[%s446 + $0x78] sm:$0xf]
        %v539 = vld [vmem:[%s446 + $0x7c] sm:$0xf]
        %v540 = vld [vmem:[%s446 + $0x80] sm:$0xf]
        %v541 = vld [vmem:[%s446 + $0x84] sm:$0xf]
        %v542 = vld [vmem:[%s446 + $0x88] sm:$0xf]
        %v543 = vld [vmem:[%s446 + $0x8c] sm:$0xf]
        %v544 = vld [vmem:[%s446 + $0x90] sm:$0xf]
        %v545 = vld [vmem:[%s446 + $0x94] sm:$0xf]
        %v546 = vld [vmem:[%s446 + $0x98] sm:$0xf]
        %v547 = vld [vmem:[%s446 + $0x9c] sm:$0xf]
        %v548 = vld [vmem:[%s446 + $0xa0] sm:$0xf]
        %v549 = vld [vmem:[%s446 + $0xa4] sm:$0xf]
        %v550 = vld [vmem:[%s446 + $0xa8] sm:$0xf]
        %v551 = vld [vmem:[%s446 + $0xac] sm:$0xf]
        %v552 = vld [vmem:[%s446 + $0xb0] sm:$0xf]
        %v553 = vld [vmem:[%s446 + $0xb4] sm:$0xf]
        %v554 = vld [vmem:[%s446 + $0xb8] sm:$0xf]
        %v555 = vld [vmem:[%s446 + $0xbc] sm:$0xf]
        %v556 = vld [vmem:[%s446 + $0xc0] sm:$0xf]
        %v557 = vld [vmem:[%s446 + $0xc4] sm:$0xf]
        %v558 = vld [vmem:[%s446 + $0xc8] sm:$0xf]
        %v559 = vld [vmem:[%s446 + $0xcc] sm:$0xf]
        %v560 = vld [vmem:[%s446 + $0xd0] sm:$0xf]
        %v561 = vld [vmem:[%s446 + $0xd4] sm:$0xf]
        %v562 = vld [vmem:[%s446 + $0xd8] sm:$0xf]
        %v563 = vld [vmem:[%s446 + $0xdc] sm:$0xf]
        %v564 = vld [vmem:[%s446 + $0xe0] sm:$0xf]
        %v565 = vld [vmem:[%s446 + $0xe4] sm:$0xf]
        %v566 = vld [vmem:[%s446 + $0xe8] sm:$0xf]
        %v567 = vld [vmem:[%s446 + $0xec] sm:$0xf]
        %v568 = vld [vmem:[%s446 + $0xf0] sm:$0xf]
        %v569 = vld [vmem:[%s446 + $0xf4] sm:$0xf]
        %v570 = vld [vmem:[%s446 + $0xf8] sm:$0xf]
        %v571 = vld [vmem:[%s446 + $0xfc] sm:$0xf]
        %v572 = vld [vmem:[%s446 + $0x100] sm:$0xf]
        %v573 = vld [vmem:[%s446 + $0x104] sm:$0xf]
        %v574 = vld [vmem:[%s446 + $0x108] sm:$0xf]
        %v575 = vld [vmem:[%s446 + $0x10c] sm:$0xf]
        %v576 = vld [vmem:[%s446 + $0x110] sm:$0xf]
        %v577 = vld [vmem:[%s446 + $0x114] sm:$0xf]
        %v578 = vld [vmem:[%s446 + $0x118] sm:$0xf]
        %v579 = vld [vmem:[%s446 + $0x11c] sm:$0xf]
        %v580 = vld [vmem:[%s446 + $0x120] sm:$0xf]
        %v581 = vld [vmem:[%s446 + $0x124] sm:$0xf]
        %v582 = vld [vmem:[%s446 + $0x128] sm:$0xf]
        %v583 = vld [vmem:[%s446 + $0x12c] sm:$0xf]
        %v584 = vld [vmem:[%s446 + $0x130] sm:$0xf]
        %v585 = vld [vmem:[%s446 + $0x134] sm:$0xf]
        %v586 = vld [vmem:[%s446 + $0x138] sm:$0xf]
        %v587 = vld [vmem:[%s446 + $0x13c] sm:$0xf]
        %v588 = vld [vmem:[%s446 + $0x140] sm:$0xf]
        %v589 = vld [vmem:[%s446 + $0x144] sm:$0xf]
        %v590 = vld [vmem:[%s446 + $0x148] sm:$0xf]
        %v591 = vld [vmem:[%s446 + $0x14c] sm:$0xf]
        %v592 = vld [vmem:[%s446 + $0x150] sm:$0xf]
        %v593 = vld [vmem:[%s446 + $0x154] sm:$0xf]
        %v594 = vld [vmem:[%s446 + $0x158] sm:$0xf]
        %v595 = vld [vmem:[%s446 + $0x15c] sm:$0xf]
        %v596 = vld [vmem:[%s446 + $0x160] sm:$0xf]
        %v597 = vld [vmem:[%s446 + $0x164] sm:$0xf]
        %v598 = vld [vmem:[%s446 + $0x168] sm:$0xf]
        %v599 = vld [vmem:[%s446 + $0x16c] sm:$0xf]
        %v600 = vld [vmem:[%s446 + $0x170] sm:$0xf]
        %v601 = vld [vmem:[%s446 + $0x174] sm:$0xf]
        %v602 = vld [vmem:[%s446 + $0x178] sm:$0xf]
        %v603 = vld [vmem:[%s446 + $0x17c] sm:$0xf]
        %v604 = vld [vmem:[%s446 + $0x180] sm:$0xf]
        %v605 = vld [vmem:[%s446 + $0x184] sm:$0xf]
        %v606 = vld [vmem:[%s446 + $0x188] sm:$0xf]
        %v607 = vld [vmem:[%s446 + $0x18c] sm:$0xf]
        %v608 = vld [vmem:[%s446 + $0x190] sm:$0xf]
        %v609 = vld [vmem:[%s446 + $0x194] sm:$0xf]
        %v610 = vld [vmem:[%s446 + $0x198] sm:$0xf]
        %v611 = vld [vmem:[%s446 + $0x19c] sm:$0xf]
        %v612 = vld [vmem:[%s446 + $0x1a0] sm:$0xf]
        %v613 = vld [vmem:[%s446 + $0x1a4] sm:$0xf]
        %v614 = vld [vmem:[%s446 + $0x1a8] sm:$0xf]
        %v615 = vld [vmem:[%s446 + $0x1ac] sm:$0xf]
        %v616 = vld [vmem:[%s446 + $0x1b0] sm:$0xf]
        %v617 = vld [vmem:[%s446 + $0x1b4] sm:$0xf]
        %v618 = vld [vmem:[%s446 + $0x1b8] sm:$0xf]
        %v619 = vld [vmem:[%s446 + $0x1bc] sm:$0xf]
        %v620 = vld [vmem:[%s446 + $0x1c0] sm:$0xf]
        %v621 = vld [vmem:[%s446 + $0x1c4] sm:$0xf]
        %v622 = vld [vmem:[%s446 + $0x1c8] sm:$0xf]
        %v623 = vld [vmem:[%s446 + $0x1cc] sm:$0xf]
        %v624 = vld [vmem:[%s446 + $0x1d0] sm:$0xf]
        %v625 = vld [vmem:[%s446 + $0x1d4] sm:$0xf]
        %v626 = vld [vmem:[%s446 + $0x1d8] sm:$0xf]
        %v627 = vld [vmem:[%s446 + $0x1dc] sm:$0xf]
        %v628 = vld [vmem:[%s446 + $0x1e0] sm:$0xf]
        %v629 = vld [vmem:[%s446 + $0x1e4] sm:$0xf]
        %v630 = vld [vmem:[%s446 + $0x1e8] sm:$0xf]
        %v631 = vld [vmem:[%s446 + $0x1ec] sm:$0xf]
        %v632 = vld [vmem:[%s446 + $0x1f0] sm:$0xf]
        %v633 = vld [vmem:[%s446 + $0x1f4] sm:$0xf]
        %v634 = vld [vmem:[%s446 + $0x1f8] sm:$0xf]
        %v635 = vld [vmem:[%s446 + $0x1fc] sm:$0xf]
        %v644 = vunpack.c.l.b16 %v500
        %v645 = vunpack.c.h.b16 %v500
        %v646 = vunpack.c.l.b16 %v501
        %v647 = vunpack.c.h.b16 %v501
        %v648 = vunpack.c.l.b16 %v502
        %v649 = vunpack.c.h.b16 %v502
        %v650 = vunpack.c.l.b16 %v503
        %v651 = vunpack.c.h.b16 %v503
        %v652 = vunpack.c.l.b16 %v504
        %v653 = vunpack.c.h.b16 %v504
        %v654 = vunpack.c.l.b16 %v505
        %v655 = vunpack.c.h.b16 %v505
        %v656 = vunpack.c.l.b16 %v506
        %v657 = vunpack.c.h.b16 %v506
        %v658 = vunpack.c.l.b16 %v507
        %v659 = vunpack.c.h.b16 %v507
        %v660 = vpack.c.b16 %v652, %v644
        %v661 = vpack.c.b16 %v653, %v645
        %v662 = vpack.c.b16 %v654, %v646
        %v663 = vpack.c.b16 %v655, %v647
        %v664 = vpack.c.b16 %v656, %v648
        %v665 = vpack.c.b16 %v657, %v649
        %v666 = vpack.c.b16 %v658, %v650
        %v667 = vpack.c.b16 %v659, %v651
        %v804 = vunpack.c.l.b16 %v508
        %v805 = vunpack.c.l.b16 %v509
        %v806 = vunpack.c.l.b16 %v510
        %v807 = vunpack.c.l.b16 %v511
        %v808 = vunpack.c.l.b16 %v512
        %v809 = vunpack.c.l.b16 %v513
        %v810 = vunpack.c.l.b16 %v514
        %v811 = vunpack.c.l.b16 %v515
        %v812 = vunpack.c.l.b16 %v516
        %v813 = vunpack.c.l.b16 %v517
        %v814 = vunpack.c.l.b16 %v518
        %v815 = vunpack.c.l.b16 %v519
        %v816 = vunpack.c.l.b16 %v520
        %v817 = vunpack.c.l.b16 %v521
        %v818 = vunpack.c.l.b16 %v522
        %v819 = vunpack.c.l.b16 %v523
        %v820 = vunpack.c.l.b16 %v524
        %v821 = vunpack.c.l.b16 %v525
        %v822 = vunpack.c.l.b16 %v526
        %v823 = vunpack.c.l.b16 %v527
        %v824 = vunpack.c.l.b16 %v528
        %v825 = vunpack.c.l.b16 %v529
        %v826 = vunpack.c.l.b16 %v530
        %v827 = vunpack.c.l.b16 %v531
        %v828 = vunpack.c.l.b16 %v532
        %v829 = vunpack.c.l.b16 %v533
        %v830 = vunpack.c.l.b16 %v534
        %v831 = vunpack.c.l.b16 %v535
        %v832 = vunpack.c.l.b16 %v536
        %v833 = vunpack.c.l.b16 %v537
        %v834 = vunpack.c.l.b16 %v538
        %v835 = vunpack.c.l.b16 %v539
        %v836 = vunpack.c.l.b16 %v540
        %v837 = vunpack.c.l.b16 %v541
        %v838 = vunpack.c.l.b16 %v542
        %v839 = vunpack.c.l.b16 %v543
        %v840 = vunpack.c.l.b16 %v544
        %v841 = vunpack.c.l.b16 %v545
        %v842 = vunpack.c.l.b16 %v546
        %v843 = vunpack.c.l.b16 %v547
        %v844 = vunpack.c.l.b16 %v548
        %v845 = vunpack.c.l.b16 %v549
        %v846 = vunpack.c.l.b16 %v550
        %v847 = vunpack.c.l.b16 %v551
        %v848 = vunpack.c.l.b16 %v552
        %v849 = vunpack.c.l.b16 %v553
        %v850 = vunpack.c.l.b16 %v554
        %v851 = vunpack.c.l.b16 %v555
        %v852 = vunpack.c.l.b16 %v556
        %v853 = vunpack.c.l.b16 %v557
        %v854 = vunpack.c.l.b16 %v558
        %v855 = vunpack.c.l.b16 %v559
        %v856 = vunpack.c.l.b16 %v560
        %v857 = vunpack.c.l.b16 %v561
        %v858 = vunpack.c.l.b16 %v562
        %v859 = vunpack.c.l.b16 %v563
        %v860 = vunpack.c.l.b16 %v564
        %v861 = vunpack.c.l.b16 %v565
        %v862 = vunpack.c.l.b16 %v566
        %v863 = vunpack.c.l.b16 %v567
        %v864 = vunpack.c.l.b16 %v568
        %v865 = vunpack.c.l.b16 %v569
        %v866 = vunpack.c.l.b16 %v570
        %v867 = vunpack.c.l.b16 %v571
        %v868 = vunpack.c.l.b16 %v572
        %v869 = vunpack.c.l.b16 %v573
        %v870 = vunpack.c.l.b16 %v574
        %v871 = vunpack.c.l.b16 %v575
        %v872 = vunpack.c.l.b16 %v576
        %v873 = vunpack.c.l.b16 %v577
        %v874 = vunpack.c.l.b16 %v578
        %v875 = vunpack.c.l.b16 %v579
        %v876 = vunpack.c.l.b16 %v580
        %v877 = vunpack.c.l.b16 %v581
        %v878 = vunpack.c.l.b16 %v582
        %v879 = vunpack.c.l.b16 %v583
        %v880 = vunpack.c.l.b16 %v584
        %v881 = vunpack.c.l.b16 %v585
        %v882 = vunpack.c.l.b16 %v586
        %v883 = vunpack.c.l.b16 %v587
        %v884 = vunpack.c.l.b16 %v588
        %v885 = vunpack.c.l.b16 %v589
        %v886 = vunpack.c.l.b16 %v590
        %v887 = vunpack.c.l.b16 %v591
        %v888 = vunpack.c.l.b16 %v592
        %v889 = vunpack.c.l.b16 %v593
        %v890 = vunpack.c.l.b16 %v594
        %v891 = vunpack.c.l.b16 %v595
        %v892 = vunpack.c.l.b16 %v596
        %v893 = vunpack.c.l.b16 %v597
        %v894 = vunpack.c.l.b16 %v598
        %v895 = vunpack.c.l.b16 %v599
        %v896 = vunpack.c.l.b16 %v600
        %v897 = vunpack.c.l.b16 %v601
        %v898 = vunpack.c.l.b16 %v602
        %v899 = vunpack.c.l.b16 %v603
        %v900 = vunpack.c.l.b16 %v604
        %v901 = vunpack.c.l.b16 %v605
        %v902 = vunpack.c.l.b16 %v606
        %v903 = vunpack.c.l.b16 %v607
        %v904 = vunpack.c.l.b16 %v608
        %v905 = vunpack.c.l.b16 %v609
        %v906 = vunpack.c.l.b16 %v610
        %v907 = vunpack.c.l.b16 %v611
        %v908 = vunpack.c.l.b16 %v612
        %v909 = vunpack.c.l.b16 %v613
        %v910 = vunpack.c.l.b16 %v614
        %v911 = vunpack.c.l.b16 %v615
        %v912 = vunpack.c.l.b16 %v616
        %v913 = vunpack.c.l.b16 %v617
        %v914 = vunpack.c.l.b16 %v618
        %v915 = vunpack.c.l.b16 %v619
        %v916 = vunpack.c.l.b16 %v620
        %v917 = vunpack.c.l.b16 %v621
        %v918 = vunpack.c.l.b16 %v622
        %v919 = vunpack.c.l.b16 %v623
        %v920 = vunpack.c.l.b16 %v624
        %v921 = vunpack.c.l.b16 %v625
        %v922 = vunpack.c.l.b16 %v626
        %v923 = vunpack.c.l.b16 %v627
        %v924 = vunpack.c.l.b16 %v628
        %v925 = vunpack.c.l.b16 %v629
        %v926 = vunpack.c.l.b16 %v630
        %v927 = vunpack.c.l.b16 %v631
        %v928 = vunpack.c.l.b16 %v632
        %v929 = vunpack.c.l.b16 %v633
        %v930 = vunpack.c.l.b16 %v634
        %v931 = vunpack.c.l.b16 %v635
        %v932 = vpack.c.b16 %v805, %v804
        %v933 = vpack.c.b16 %v807, %v806
        %v934 = vpack.c.b16 %v809, %v808
        %v935 = vpack.c.b16 %v811, %v810
        %v936 = vpack.c.b16 %v813, %v812
        %v937 = vpack.c.b16 %v815, %v814
        %v938 = vpack.c.b16 %v817, %v816
        %v939 = vpack.c.b16 %v819, %v818
        %v940 = vpack.c.b16 %v821, %v820
        %v941 = vpack.c.b16 %v823, %v822
        %v942 = vpack.c.b16 %v825, %v824
        %v943 = vpack.c.b16 %v827, %v826
        %v944 = vpack.c.b16 %v829, %v828
        %v945 = vpack.c.b16 %v831, %v830
        %v946 = vpack.c.b16 %v833, %v832
        %v947 = vpack.c.b16 %v835, %v834
        %v948 = vpack.c.b16 %v837, %v836
        %v949 = vpack.c.b16 %v839, %v838
        %v950 = vpack.c.b16 %v841, %v840
        %v951 = vpack.c.b16 %v843, %v842
        %v952 = vpack.c.b16 %v845, %v844
        %v953 = vpack.c.b16 %v847, %v846
        %v954 = vpack.c.b16 %v849, %v848
        %v955 = vpack.c.b16 %v851, %v850
        %v956 = vpack.c.b16 %v853, %v852
        %v957 = vpack.c.b16 %v855, %v854
        %v958 = vpack.c.b16 %v857, %v856
        %v959 = vpack.c.b16 %v859, %v858
        %v960 = vpack.c.b16 %v861, %v860
        %v961 = vpack.c.b16 %v863, %v862
        %v962 = vpack.c.b16 %v865, %v864
        %v963 = vpack.c.b16 %v867, %v866
        %v964 = vpack.c.b16 %v869, %v868
        %v965 = vpack.c.b16 %v871, %v870
        %v966 = vpack.c.b16 %v873, %v872
        %v967 = vpack.c.b16 %v875, %v874
        %v968 = vpack.c.b16 %v877, %v876
        %v969 = vpack.c.b16 %v879, %v878
        %v970 = vpack.c.b16 %v881, %v880
        %v971 = vpack.c.b16 %v883, %v882
        %v972 = vpack.c.b16 %v885, %v884
        %v973 = vpack.c.b16 %v887, %v886
        %v974 = vpack.c.b16 %v889, %v888
        %v975 = vpack.c.b16 %v891, %v890
        %v976 = vpack.c.b16 %v893, %v892
        %v977 = vpack.c.b16 %v895, %v894
        %v978 = vpack.c.b16 %v897, %v896
        %v979 = vpack.c.b16 %v899, %v898
        %v980 = vpack.c.b16 %v901, %v900
        %v981 = vpack.c.b16 %v903, %v902
        %v982 = vpack.c.b16 %v905, %v904
        %v983 = vpack.c.b16 %v907, %v906
        %v984 = vpack.c.b16 %v909, %v908
        %v985 = vpack.c.b16 %v911, %v910
        %v986 = vpack.c.b16 %v913, %v912
        %v987 = vpack.c.b16 %v915, %v914
        %v988 = vpack.c.b16 %v917, %v916
        %v989 = vpack.c.b16 %v919, %v918
        %v990 = vpack.c.b16 %v921, %v920
        %v991 = vpack.c.b16 %v923, %v922
        %v992 = vpack.c.b16 %v925, %v924
        %v993 = vpack.c.b16 %v927, %v926
        %v994 = vpack.c.b16 %v929, %v928
        %v995 = vpack.c.b16 %v931, %v930
        %1060 = vmatprep.subr.bf16.mxu0 0
        %1061 = vmatpush1.bf16.msra.mxu0 %v932
        %1062 = vmatprep.subr.bf16.mxu0 0
        %1063 = vmatpush1.bf16.msra.mxu0 %v933
        %1064 = vmatprep.subr.bf16.mxu0 0
        %1065 = vmatpush1.bf16.msra.mxu0 %v934
        %1066 = vmatprep.subr.bf16.mxu0 0
        %1067 = vmatpush1.bf16.msra.mxu0 %v935
        %1068 = vmatprep.subr.bf16.mxu0 0
        %1069 = vmatpush1.bf16.msra.mxu0 %v936
        %1070 = vmatprep.subr.bf16.mxu0 0
        %1071 = vmatpush1.bf16.msra.mxu0 %v937
        %1072 = vmatprep.subr.bf16.mxu0 0
        %1073 = vmatpush1.bf16.msra.mxu0 %v938
        %1074 = vmatprep.subr.bf16.mxu0 0
        %1075 = vmatpush1.bf16.msra.mxu0 %v939
        %1076 = vmatprep.subr.bf16.mxu0 0
        %1077 = vmatpush1.bf16.msra.mxu0 %v940
        %1078 = vmatprep.subr.bf16.mxu0 0
        %1079 = vmatpush1.bf16.msra.mxu0 %v941
        %1080 = vmatprep.subr.bf16.mxu0 0
        %1081 = vmatpush1.bf16.msra.mxu0 %v942
        %1082 = vmatprep.subr.bf16.mxu0 0
        %1083 = vmatpush1.bf16.msra.mxu0 %v943
        %1084 = vmatprep.subr.bf16.mxu0 0
        %1085 = vmatpush1.bf16.msra.mxu0 %v944
        %1086 = vmatprep.subr.bf16.mxu0 0
        %1087 = vmatpush1.bf16.msra.mxu0 %v945
        %1088 = vmatprep.subr.bf16.mxu0 0
        %1089 = vmatpush1.bf16.msra.mxu0 %v946
        %1090 = vmatprep.subr.bf16.mxu0 0
        %1091 = vmatpush1.bf16.msra.mxu0 %v947
        %1092 = vmatprep.mubr.bf16.mxu0 %v661
        %1093 = vmatmul.mubr.bf16.gmra.mrb[0].mxu0 %v660
        %v1094 = vpop.f32.mrb[0].mxu0
        %v1095 = vadd.f32 0.0, %v1094
        %v1096 = vpop.f32.mrb[0].mxu0
        %v1097 = vpop.f32.mrb[0].mxu0
        %v1098 = vadd.f32 0.0, %v1097
        %v1099 = vpop.f32.mrb[0].mxu0
        %1100 = vdwg.mxu0
        %1101 = vmatprep.subr.bf16.mxu0 0
        %1102 = vmatpush1.bf16.msra.mxu0 %v948
        %1103 = vmatprep.subr.bf16.mxu0 0
        %1104 = vmatpush1.bf16.msra.mxu0 %v949
        %1105 = vmatprep.subr.bf16.mxu0 0
        %1106 = vmatpush1.bf16.msra.mxu0 %v950
        %1107 = vmatprep.subr.bf16.mxu0 0
        %1108 = vmatpush1.bf16.msra.mxu0 %v951
        %1109 = vmatprep.subr.bf16.mxu0 0
        %1110 = vmatpush1.bf16.msra.mxu0 %v952
        %1111 = vmatprep.subr.bf16.mxu0 0
        %1112 = vmatpush1.bf16.msra.mxu0 %v953
        %1113 = vmatprep.subr.bf16.mxu0 0
        %1114 = vmatpush1.bf16.msra.mxu0 %v954
        %1115 = vmatprep.subr.bf16.mxu0 0
        %1116 = vmatpush1.bf16.msra.mxu0 %v955
        %1117 = vmatprep.subr.bf16.mxu0 0
        %1118 = vmatpush1.bf16.msra.mxu0 %v956
        %1119 = vmatprep.subr.bf16.mxu0 0
        %1120 = vmatpush1.bf16.msra.mxu0 %v957
        %1121 = vmatprep.subr.bf16.mxu0 0
        %1122 = vmatpush1.bf16.msra.mxu0 %v958
        %1123 = vmatprep.subr.bf16.mxu0 0
        %1124 = vmatpush1.bf16.msra.mxu0 %v959
        %1125 = vmatprep.subr.bf16.mxu0 0
        %1126 = vmatpush1.bf16.msra.mxu0 %v960
        %1127 = vmatprep.subr.bf16.mxu0 0
        %1128 = vmatpush1.bf16.msra.mxu0 %v961
        %1129 = vmatprep.subr.bf16.mxu0 0
        %1130 = vmatpush1.bf16.msra.mxu0 %v962
        %1131 = vmatprep.subr.bf16.mxu0 0
        %1132 = vmatpush1.bf16.msra.mxu0 %v963
        %1133 = vmatprep.mubr.bf16.mxu0 %v663
        %1134 = vmatmul.mubr.bf16.gmra.mrb[0].mxu0 %v662
        %v1135 = vpop.f32.mrb[0].mxu0
        %v1136 = vadd.f32 %v1095, %v1135
        %v1137 = vpop.f32.mrb[0].mxu0
        %v1138 = vpop.f32.mrb[0].mxu0
        %v1139 = vadd.f32 %v1098, %v1138
        %v1140 = vpop.f32.mrb[0].mxu0
        %1141 = vdwg.mxu0
        %1142 = vmatprep.subr.bf16.mxu0 0
        %1143 = vmatpush1.bf16.msra.mxu0 %v964
        %1144 = vmatprep.subr.bf16.mxu0 0
        %1145 = vmatpush1.bf16.msra.mxu0 %v965
        %1146 = vmatprep.subr.bf16.mxu0 0
        %1147 = vmatpush1.bf16.msra.mxu0 %v966
        %1148 = vmatprep.subr.bf16.mxu0 0
        %1149 = vmatpush1.bf16.msra.mxu0 %v967
        %1150 = vmatprep.subr.bf16.mxu0 0
        %1151 = vmatpush1.bf16.msra.mxu0 %v968
        %1152 = vmatprep.subr.bf16.mxu0 0
        %1153 = vmatpush1.bf16.msra.mxu0 %v969
        %1154 = vmatprep.subr.bf16.mxu0 0
        %1155 = vmatpush1.bf16.msra.mxu0 %v970
        %1156 = vmatprep.subr.bf16.mxu0 0
        %1157 = vmatpush1.bf16.msra.mxu0 %v971
        %1158 = vmatprep.subr.bf16.mxu0 0
        %1159 = vmatpush1.bf16.msra.mxu0 %v972
        %1160 = vmatprep.subr.bf16.mxu0 0
        %1161 = vmatpush1.bf16.msra.mxu0 %v973
        %1162 = vmatprep.subr.bf16.mxu0 0
        %1163 = vmatpush1.bf16.msra.mxu0 %v974
        %1164 = vmatprep.subr.bf16.mxu0 0
        %1165 = vmatpush1.bf16.msra.mxu0 %v975
        %1166 = vmatprep.subr.bf16.mxu0 0
        %1167 = vmatpush1.bf16.msra.mxu0 %v976
        %1168 = vmatprep.subr.bf16.mxu0 0
        %1169 = vmatpush1.bf16.msra.mxu0 %v977
        %1170 = vmatprep.subr.bf16.mxu0 0
        %1171 = vmatpush1.bf16.msra.mxu0 %v978
        %1172 = vmatprep.subr.bf16.mxu0 0
        %1173 = vmatpush1.bf16.msra.mxu0 %v979
        %1174 = vmatprep.mubr.bf16.mxu0 %v665
        %1175 = vmatmul.mubr.bf16.gmra.mrb[0].mxu0 %v664
        %v1176 = vpop.f32.mrb[0].mxu0
        %v1177 = vadd.f32 %v1136, %v1176
        %v1178 = vpop.f32.mrb[0].mxu0
        %v1179 = vpop.f32.mrb[0].mxu0
        %v1180 = vadd.f32 %v1139, %v1179
        %v1181 = vpop.f32.mrb[0].mxu0
        %1182 = vdwg.mxu0
        %1183 = vmatprep.subr.bf16.mxu0 0
        %1184 = vmatpush1.bf16.msra.mxu0 %v980
        %1185 = vmatprep.subr.bf16.mxu0 0
        %1186 = vmatpush1.bf16.msra.mxu0 %v981
        %1187 = vmatprep.subr.bf16.mxu0 0
        %1188 = vmatpush1.bf16.msra.mxu0 %v982
        %1189 = vmatprep.subr.bf16.mxu0 0
        %1190 = vmatpush1.bf16.msra.mxu0 %v983
        %1191 = vmatprep.subr.bf16.mxu0 0
        %1192 = vmatpush1.bf16.msra.mxu0 %v984
        %1193 = vmatprep.subr.bf16.mxu0 0
        %1194 = vmatpush1.bf16.msra.mxu0 %v985
        %1195 = vmatprep.subr.bf16.mxu0 0
        %1196 = vmatpush1.bf16.msra.mxu0 %v986
        %1197 = vmatprep.subr.bf16.mxu0 0
        %1198 = vmatpush1.bf16.msra.mxu0 %v987
        %1199 = vmatprep.subr.bf16.mxu0 0
        %1200 = vmatpush1.bf16.msra.mxu0 %v988
        %1201 = vmatprep.subr.bf16.mxu0 0
        %1202 = vmatpush1.bf16.msra.mxu0 %v989
        %1203 = vmatprep.subr.bf16.mxu0 0
        %1204 = vmatpush1.bf16.msra.mxu0 %v990
        %1205 = vmatprep.subr.bf16.mxu0 0
        %1206 = vmatpush1.bf16.msra.mxu0 %v991
        %1207 = vmatprep.subr.bf16.mxu0 0
        %1208 = vmatpush1.bf16.msra.mxu0 %v992
        %1209 = vmatprep.subr.bf16.mxu0 0
        %1210 = vmatpush1.bf16.msra.mxu0 %v993
        %1211 = vmatprep.subr.bf16.mxu0 0
        %1212 = vmatpush1.bf16.msra.mxu0 %v994
        %1213 = vmatprep.subr.bf16.mxu0 0
        %1214 = vmatpush1.bf16.msra.mxu0 %v995
        %1215 = vmatprep.mubr.bf16.mxu0 %v667
        %1216 = vmatmul.mubr.bf16.gmra.mrb[0].mxu0 %v666
        %v1217 = vpop.f32.mrb[0].mxu0
        %v1218 = vadd.f32 %v1177, %v1217
        %v1219 = vpop.f32.mrb[0].mxu0
        %v1220 = vpop.f32.mrb[0].mxu0
        %v1221 = vadd.f32 %v1180, %v1220
        %v1222 = vpop.f32.mrb[0].mxu0
        %1223 = vdwg.mxu0
        %v1224 = vadd.f32 %v498, %v1218
        %v1225 = vadd.f32 %v499, %v1221
        %1226 = vst [vmem:[#allocation2] sm:$0xff] %v1224
        %1227 = vst [vmem:[#allocation2 + $0x8] sm:$0xff] %v1225
      $region56: #{mlnet_forward.1} parent=47 // pred_fallthru
        _
      // Predicated region
      $region57: #{mlnet_forward.1} parent=47 // pred_check
        %p1228 = pneg %p488
      $region58: #{mlnet_forward.1} parent=47 // pred_check_branch
        %1230 = sbr.rel (%p1228) target = $region60
      $region59: #{mlnet_forward.1} parent=47 // pred_region
        %v1231 = vld [vmem:[#allocation2] sm:$0xff]
        %v1232 = vld [vmem:[#allocation2 + $0x8] sm:$0xff]
        %v1233 = vld [vmem:[%s2] sm:$0x1]
        %v1235 = vlaneseq
        %v1236 = vshrl.u32 %v1235, 7
        %v1237 = vsub.s32 0, %v1236
        %v1238 = vrot.slane %v1233, %v1237
        %v1240 = vadd.f32 %v1231, %v1238
        %v1241 = vadd.f32 %v1232, %v1238
        %v1242 = vmax.f32 %v1240, 0.0
        %v1243 = vmax.f32 %v1241, 0.0
        %v1244 = vpack.c.bf16 %v1243, %v1242
        %v1245 = vld [vmem:[%s3] sm:$0xf]
        %v1246 = vld [vmem:[%s3 + $0x4] sm:$0xf]
        %v1247 = vld [vmem:[%s3 + $0x8] sm:$0xf]
        %v1248 = vld [vmem:[%s3 + $0xc] sm:$0xf]
        %v1249 = vld [vmem:[%s3 + $0x10] sm:$0xf]
        %v1250 = vld [vmem:[%s3 + $0x14] sm:$0xf]
        %v1251 = vld [vmem:[%s3 + $0x18] sm:$0xf]
        %v1252 = vld [vmem:[%s3 + $0x1c] sm:$0xf]
        %v1253 = vld [vmem:[%s3 + $0x20] sm:$0xf]
        %v1254 = vld [vmem:[%s3 + $0x24] sm:$0xf]
        %v1255 = vld [vmem:[%s3 + $0x28] sm:$0xf]
        %v1256 = vld [vmem:[%s3 + $0x2c] sm:$0xf]
        %v1257 = vld [vmem:[%s3 + $0x30] sm:$0xf]
        %v1258 = vld [vmem:[%s3 + $0x34] sm:$0xf]
        %v1259 = vld [vmem:[%s3 + $0x38] sm:$0xf]
        %v1260 = vld [vmem:[%s3 + $0x3c] sm:$0xf]
        %v1261 = vld [vmem:[%s4] sm:$0x1]
        %v1263 = vlaneseq
        %v1264 = vshrl.u32 %v1263, 7
        %v1265 = vsub.s32 0, %v1264
        %v1266 = vrot.slane %v1261, %v1265
        %v1284 = vunpack.c.l.b16 %v1245
        %v1285 = vunpack.c.l.b16 %v1246
        %v1286 = vunpack.c.l.b16 %v1247
        %v1287 = vunpack.c.l.b16 %v1248
        %v1288 = vunpack.c.l.b16 %v1249
        %v1289 = vunpack.c.l.b16 %v1250
        %v1290 = vunpack.c.l.b16 %v1251
        %v1291 = vunpack.c.l.b16 %v1252
        %v1292 = vunpack.c.l.b16 %v1253
        %v1293 = vunpack.c.l.b16 %v1254
        %v1294 = vunpack.c.l.b16 %v1255
        %v1295 = vunpack.c.l.b16 %v1256
        %v1296 = vunpack.c.l.b16 %v1257
        %v1297 = vunpack.c.l.b16 %v1258
        %v1298 = vunpack.c.l.b16 %v1259
        %v1299 = vunpack.c.l.b16 %v1260
        %v1300 = vpack.c.b16 %v1285, %v1284
        %v1301 = vpack.c.b16 %v1287, %v1286
        %v1302 = vpack.c.b16 %v1289, %v1288
        %v1303 = vpack.c.b16 %v1291, %v1290
        %v1304 = vpack.c.b16 %v1293, %v1292
        %v1305 = vpack.c.b16 %v1295, %v1294
        %v1306 = vpack.c.b16 %v1297, %v1296
        %v1307 = vpack.c.b16 %v1299, %v1298
        %1316 = vmatprep.subr.bf16.mxu0 0
        %1317 = vmatpush1.bf16.msra.mxu0 %v1300
        %1318 = vmatprep.subr.bf16.mxu0 0
        %1319 = vmatpush1.bf16.msra.mxu0 %v1301
        %1320 = vmatprep.subr.bf16.mxu0 0
        %1321 = vmatpush1.bf16.msra.mxu0 %v1302
        %1322 = vmatprep.subr.bf16.mxu0 0
        %1323 = vmatpush1.bf16.msra.mxu0 %v1303
        %1324 = vmatprep.subr.bf16.mxu0 0
        %1325 = vmatpush1.bf16.msra.mxu0 %v1304
        %1326 = vmatprep.subr.bf16.mxu0 0
        %1327 = vmatpush1.bf16.msra.mxu0 %v1305
        %1328 = vmatprep.subr.bf16.mxu0 0
        %1329 = vmatpush1.bf16.msra.mxu0 %v1306
        %1330 = vmatprep.subr.bf16.mxu0 0
        %1331 = vmatpush1.bf16.msra.mxu0 %v1307
        %1332 = vmatprep.subr.bf16.mxu0 0
        %1333 = vmatpush1.bf16.msra.mxu0 0
        %1334 = vmatprep.subr.bf16.mxu0 0
        %1335 = vmatpush1.bf16.msra.mxu0 0
        %1336 = vmatprep.subr.bf16.mxu0 0
        %1337 = vmatpush1.bf16.msra.mxu0 0
        %1338 = vmatprep.subr.bf16.mxu0 0
        %1339 = vmatpush1.bf16.msra.mxu0 0
        %1340 = vmatprep.subr.bf16.mxu0 0
        %1341 = vmatpush1.bf16.msra.mxu0 0
        %1342 = vmatprep.subr.bf16.mxu0 0
        %1343 = vmatpush1.bf16.msra.mxu0 0
        %1344 = vmatprep.subr.bf16.mxu0 0
        %1345 = vmatpush1.bf16.msra.mxu0 0
        %1346 = vmatprep.subr.bf16.mxu0 0
        %1347 = vmatpush1.bf16.msra.mxu0 0
        %1348 = vmatprep.mubr.bf16.mxu0 0
        %1349 = vmatmul.mubr.bf16.gmra.mrb[0].mxu0 %v1244
        %v1350 = vpop.f32.mrb[0].mxu0
        %v1351 = vadd.f32 %v1266, %v1350
        %v1352 = vpop.f32.mrb[0].mxu0
        %v1353 = vpop.f32.mrb[0].mxu0
        %v1354 = vadd.f32 %v1266, %v1353
        %v1355 = vpop.f32.mrb[0].mxu0
        %1356 = vdwg.mxu0
        %1357 = vst [vmem:[%s470] sm:$0xff] %v1351
        %1358 = vst [vmem:[%s470 + $0x8] sm:$0xff] %v1354
        %v1359 = vmul.f32 %v1351, %v1351
        %v1360 = vmul.f32 %v1354, %v1354
        %1361 = vadd.xlane.f32.xlu0 %v1359
        %v1362 = vpop.xlane.xlu0 %1361
        %1363 = vadd.xlane.f32.xlu0 %v1360
        %v1364 = vpop.xlane.xlu0 %1363
        %v1365 = vadd.f32 %v1362, 1e-12
        %v1366 = vadd.f32 %v1364, 1e-12
        %v1367 = vrsqrt.pop %v1365
        %v1368 = vrsqrt.pop %v1366
        %v1369 = vmul.f32 %v1351, %v1367
        %v1370 = vmul.f32 %v1354, %v1368
        %v1371 = vpack.c.bf16 %v1370, %v1369
        %1372 = vst [vmem:[#allocation3] sm:$0xff] %v1371
      $region60: #{mlnet_forward.1} parent=47 // pred_fallthru
        _
      %p1373 = scmp.ge.s32.totalorder %s25, 1
      // Predicated region
      $region61: #{mlnet_forward.1} parent=47 // pred_check
        %p1374 = pneg %p1373
      $region62: #{mlnet_forward.1} parent=47 // pred_check_branch
        %1376 = sbr.rel (%p1374) target = $region64
      $region63: #{mlnet_forward.1} parent=47 // pred_region
        %s1377 = ssub.s32 %s25, 1
        %v1378 = vld [vmem:[#allocation3] sm:$0xff]
        %v1379 = vld [vmem:[%s456] sm:$0xf]
        %v1380 = vld [vmem:[%s456 + $0x4] sm:$0xf]
        %v1381 = vld [vmem:[%s456 + $0x8] sm:$0xf]
        %v1382 = vld [vmem:[%s456 + $0xc] sm:$0xf]
        %v1383 = vld [vmem:[%s456 + $0x10] sm:$0xf]
        %v1384 = vld [vmem:[%s456 + $0x14] sm:$0xf]
        %v1385 = vld [vmem:[%s456 + $0x18] sm:$0xf]
        %v1386 = vld [vmem:[%s456 + $0x1c] sm:$0xf]
        %v1387 = vld [vmem:[%s456 + $0x20] sm:$0xf]
        %v1388 = vld [vmem:[%s456 + $0x24] sm:$0xf]
        %v1389 = vld [vmem:[%s456 + $0x28] sm:$0xf]
        %v1390 = vld [vmem:[%s456 + $0x2c] sm:$0xf]
        %v1391 = vld [vmem:[%s456 + $0x30] sm:$0xf]
        %v1392 = vld [vmem:[%s456 + $0x34] sm:$0xf]
        %v1393 = vld [vmem:[%s456 + $0x38] sm:$0xf]
        %v1394 = vld [vmem:[%s456 + $0x3c] sm:$0xf]
        %v1411 = vunpack.c.l.b16 %v1379
        %v1412 = vunpack.c.l.b16 %v1380
        %v1413 = vunpack.c.l.b16 %v1381
        %v1414 = vunpack.c.l.b16 %v1382
        %v1415 = vunpack.c.l.b16 %v1383
        %v1416 = vunpack.c.l.b16 %v1384
        %v1417 = vunpack.c.l.b16 %v1385
        %v1418 = vunpack.c.l.b16 %v1386
        %v1419 = vunpack.c.l.b16 %v1387
        %v1420 = vunpack.c.l.b16 %v1388
        %v1421 = vunpack.c.l.b16 %v1389
        %v1422 = vunpack.c.l.b16 %v1390
        %v1423 = vunpack.c.l.b16 %v1391
        %v1424 = vunpack.c.l.b16 %v1392
        %v1425 = vunpack.c.l.b16 %v1393
        %v1426 = vunpack.c.l.b16 %v1394
        %v1427 = vpack.c.b16 %v1412, %v1411
        %v1428 = vpack.c.b16 %v1414, %v1413
        %v1429 = vpack.c.b16 %v1416, %v1415
        %v1430 = vpack.c.b16 %v1418, %v1417
        %v1431 = vpack.c.b16 %v1420, %v1419
        %v1432 = vpack.c.b16 %v1422, %v1421
        %v1433 = vpack.c.b16 %v1424, %v1423
        %v1434 = vpack.c.b16 %v1426, %v1425
        %1443 = vmatprep.subr.bf16.mxu0 0
        %1444 = vmatpush1.bf16.msra.mxu0 %v1427
        %1445 = vmatprep.subr.bf16.mxu0 0
        %1446 = vmatpush1.bf16.msra.mxu0 %v1428
        %1447 = vmatprep.subr.bf16.mxu0 0
        %1448 = vmatpush1.bf16.msra.mxu0 %v1429
        %1449 = vmatprep.subr.bf16.mxu0 0
        %1450 = vmatpush1.bf16.msra.mxu0 %v1430
        %1451 = vmatprep.subr.bf16.mxu0 0
        %1452 = vmatpush1.bf16.msra.mxu0 %v1431
        %1453 = vmatprep.subr.bf16.mxu0 0
        %1454 = vmatpush1.bf16.msra.mxu0 %v1432
        %1455 = vmatprep.subr.bf16.mxu0 0
        %1456 = vmatpush1.bf16.msra.mxu0 %v1433
        %1457 = vmatprep.subr.bf16.mxu0 0
        %1458 = vmatpush1.bf16.msra.mxu0 %v1434
        %1459 = vmatprep.subr.bf16.mxu0 0
        %1460 = vmatpush1.bf16.msra.mxu0 0
        %1461 = vmatprep.subr.bf16.mxu0 0
        %1462 = vmatpush1.bf16.msra.mxu0 0
        %1463 = vmatprep.subr.bf16.mxu0 0
        %1464 = vmatpush1.bf16.msra.mxu0 0
        %1465 = vmatprep.subr.bf16.mxu0 0
        %1466 = vmatpush1.bf16.msra.mxu0 0
        %1467 = vmatprep.subr.bf16.mxu0 0
        %1468 = vmatpush1.bf16.msra.mxu0 0
        %1469 = vmatprep.subr.bf16.mxu0 0
        %1470 = vmatpush1.bf16.msra.mxu0 0
        %1471 = vmatprep.subr.bf16.mxu0 0
        %1472 = vmatpush1.bf16.msra.mxu0 0
        %1473 = vmatprep.subr.bf16.mxu0 0
        %1474 = vmatpush1.bf16.msra.mxu0 0
        %1475 = vmatprep.mubr.bf16.mxu0 0
        %1476 = vmatmul.mubr.bf16.gmra.mrb[0].mxu0 %v1378
        %v1477 = vpop.f32.mrb[0].mxu0
        %v1478 = vadd.f32 0.0, %v1477
        %v1479 = vpop.f32.mrb[0].mxu0
        %v1480 = vpop.f32.mrb[0].mxu0
        %v1481 = vadd.f32 0.0, %v1480
        %v1482 = vpop.f32.mrb[0].mxu0
        %1483 = vdwg.mxu0
        %v1484 = vmax.f32 %v1478, -1.0
        %v1485 = vmax.f32 %v1481, -1.0
        %v1486 = vmin.f32 %v1484, 1.0
        %v1487 = vmin.f32 %v1485, 1.0
        %v1488 = vmul.f32 %v1486, %v1486
        %v1489 = vmul.f32 %v1487, %v1487
        %v1490 = vsub.f32 1.0, %v1488
        %v1491 = vsub.f32 1.0, %v1489
        %v1492 = vmax.f32 %v1490, 0.0
        %v1493 = vmax.f32 %v1491, 0.0
        %v1494 = vrsqrt.pop %v1492
        %v1495 = vmul.f32 %v1492, %v1494
        %vm1496 = vcmp.eq.f32.partialorder %v1492, inf
        %v1497 = vsel %vm1496, %v1492, %v1495
        %vm1498 = vcmp.eq.f32.partialorder %v1492, 0.0
        %v1499 = vand.u32 %v1492, 2147483648
        %v1500 = vsel %vm1498, %v1499, %v1497
        %v1501 = vrsqrt.pop %v1493
        %v1502 = vmul.f32 %v1493, %v1501
        %vm1503 = vcmp.eq.f32.partialorder %v1493, inf
        %v1504 = vsel %vm1503, %v1493, %v1502
        %vm1505 = vcmp.eq.f32.partialorder %v1493, 0.0
        %v1506 = vand.u32 %v1493, 2147483648
        %v1507 = vsel %vm1505, %v1506, %v1504
        %v1508 = vmul.f32 %v1486, 0.87758255
        %v1509 = vmul.f32 %v1487, 0.87758255
        %v1510 = vmul.f32 %v1500, 0.47942555
        %v1511 = vmul.f32 %v1507, 0.47942555
        %v1512 = vsub.f32 %v1508, %v1510
        %v1513 = vsub.f32 %v1509, %v1511
        %vm1514 = vcmp.gt.f32.partialorder %v1486, -0.87758255
        %vm1515 = vcmp.gt.f32.partialorder %v1487, -0.87758255
        %v1516 = vsub.f32 %v1486, 0.23971277
        %v1517 = vsub.f32 %v1487, 0.23971277
        %v1518 = vsel %vm1514, %v1512, %v1516
        %v1519 = vsel %vm1515, %v1513, %v1517
        %v1520 = vld [vmem:[%s464] sm:$0xff]
        %v1521 = vld [vmem:[%s464 + $0x8] sm:$0xff]
        %v1522 = vlaneseq
        %v1523 = vand.u32 %v1522, 127
        %s1524 = smul.u32 %s1377, 128
        %v1525 = vstv %s1524
        %v1526 = vadd.s32 %v1523, %v1525
        %1527 = vset.pattern.permute.xlu0 0
        %1528 = vperm.xlu0 %1527, %v1520
        %v1529 = vpop.permute.xlu0 %1528
        %1530 = vset.pattern.permute.xlu0 0
        %1531 = vperm.xlu0 %1530, %v1521
        %v1532 = vpop.permute.xlu0 %1531
        %vm1533 = vcmp.eq.s32.totalorder %v1526, %v1529
        %vm1534 = vcmp.eq.s32.totalorder %v1526, %v1532
        %v1535 = vsel %vm1533, %v1518, %v1486
        %v1536 = vsel %vm1534, %v1519, %v1487
        %v1537 = vmul.f32 %v1535, 30.0
        %v1538 = vmul.f32 %v1536, 30.0
        %1539 = vst [vmem:[%s482] sm:$0xff] %v1537
        %1540 = vst [vmem:[%s482 + $0x8] sm:$0xff] %v1538
      $region64: #{mlnet_forward.1} parent=47 // pred_fallthru
        _
      %s1541 = smul.u32 2, %s24
      %p1542 = scmp.lt.s32.totalorder %s1541, 1
      %s1543 = scalar_select %p1542, %s1541, 1
      %s1544 = smul.addr %s1543, 8
      %s1545 = scalar_lea.vmem %s7, %s1544
      %s1546 = ssub.s32 %s25, 1
      %p1547 = scmp.gt.s32.totalorder %s1546, 0
      %s1548 = scalar_select %p1547, %s1546, 0
      %s1549 = smul.u32 2, %s24
      %p1550 = scmp.lt.s32.totalorder %s1549, 1
      %s1551 = scalar_select %p1550, %s1549, 1
      %p1552 = scmp.lt.s32.totalorder %s1548, 0
      %s1553 = scalar_select %p1552, %s1548, 0
      %s1554 = sadd.s32 %s1553, %s1551
      %s1555 = smul.addr %s1554, 8
      %s1556 = scalar_lea.vmem %s8, %s1555
      // Predicated region
      $region65: #{mlnet_forward.1} parent=47 // pred_check
        %p1557 = pneg %p233
      $region66: #{mlnet_forward.1} parent=47 // pred_check_branch
        %1559 = sbr.rel (%p1557) target = $region68
      $region67: #{mlnet_forward.1} parent=47 // pred_region
        %s1560 = smul.u32 2, %s24
      $region68: #{mlnet_forward.1} parent=47 // pred_fallthru
        _
      // Predicated region
      $region69: #{mlnet_forward.1} parent=47 // pred_check
        %p1561 = pneg %p267
      $region70: #{mlnet_forward.1} parent=47 // pred_check_branch
        %1563 = sbr.rel (%p1561) target = $region72
      $region71: #{mlnet_forward.1} parent=47 // pred_region
        %s1564 = ssub.s32 %s25, 1
        %p1565 = scmp.gt.s32.totalorder %s1564, 0
        %s1566 = scalar_select %p1565, %s1564, 0
        %s1567 = smul.u32 2, %s24
      $region72: #{mlnet_forward.1} parent=47 // pred_fallthru
        _
      // Predicated region
      $region73: #{mlnet_forward.1} parent=47 // pred_check
        %p1568 = pneg %p233
      $region74: #{mlnet_forward.1} parent=47 // pred_check_branch
        %1570 = sbr.rel (%p1568) target = $region76
      $region75: #{mlnet_forward.1} parent=47 // pred_region
        %s1571 = smul.u32 2, %s24
        %p1572 = scmp.lt.s32.totalorder %s1571, 1
        %s1573 = scalar_select %p1572, %s1571, 1
        %s1574 = smul.addr %s1573, 8
        %s1575 = scalar_lea.vmem %s7, %s1574
      $region76: #{mlnet_forward.1} parent=47 // pred_fallthru
        _
    $region48: #{mlnet_forward.1} parent=5 // pred_fallthru
      _
    %p1576 = scmp.le.s32.totalorder 2, %s15
    // Predicated region
    $region77: #{mlnet_forward.1} parent=5 // pred_check
      %p1577 = pneg %p1576
    $region78: #{mlnet_forward.1} parent=5 // pred_check_branch
      %1579 = sbr.rel (%p1577) target = $region80
    $region79: #{mlnet_forward.1} parent=5 // pred_region
      %s1580 = ssub.s32 %s15, 2
      // Predicated region
      $region81: #{mlnet_forward.1} parent=79 // pred_check
        %p1581 = pneg %p273
      $region82: #{mlnet_forward.1} parent=79 // pred_check_branch
        %1583 = sbr.rel (%p1581) target = $region84
      $region83: #{mlnet_forward.1} parent=79 // pred_region
        %s1584 = ssub.s32 %s27, 1
        %p1585 = scmp.gt.s32.totalorder %s1584, 0
        %s1586 = scalar_select %p1585, %s1584, 0
        %s1587 = smul.u32 2, %s26
        %p1588 = scmp.lt.s32.totalorder %s1587, 1
        %s1589 = scalar_select %p1588, %s1587, 1
        %p1590 = scmp.lt.s32.totalorder %s1586, 0
        %s1591 = scalar_select %p1590, %s1586, 0
        %s1592 = sadd.s32 %s1591, %s1589
        %s1593 = smul.addr %s1592, 8
        %s1594 = scalar_lea.vmem %s8, %s1593
      $region84: #{mlnet_forward.1} parent=79 // pred_fallthru
        _
    $region80: #{mlnet_forward.1} parent=5 // pred_fallthru
      _
  $region6: #{mlnet_forward.1} parent=0 // loop_footer
    %s19 = sadd.s32 1, %s15
  $region7: #{mlnet_forward.1} parent=0 // loop_footer_branch
    %14 = sbr.rel target = $region3
  $region8: #{mlnet_forward.1} parent=0 // loop_exit
    _

</llo_original>
